<compile_context>
chip_gen: v7x
topology: tpu7x:2x2x1
jax: 0.10.0
libtpu: 0.0.40
codegen_flags: <defaults>
</compile_context>

<pallas_src>
import functools

import jax
import jax.numpy as jnp
from jax.experimental import pallas as pl
from jax.experimental.pallas import tpu as pltpu

EPS = 1e-5


def _vmem_limit_bytes():
    """Generation-aware scoped-VMEM limit: 64 MiB on 128-MiB parts (v5e/v6e),
    48 MiB on 64-MiB parts (v7x); conservative 48 MiB if the query fails."""
    phys = 64 * 1024 * 1024
    try:
        get_info = getattr(pltpu, "get_tpu_info", None)
        if get_info is not None:
            phys = int(getattr(get_info(), "vmem_capacity_bytes", phys)) or phys
    except Exception:
        pass
    return min((phys * 3) // 4, 64 * 1024 * 1024)


def _pick_tile_hw(hw, bytes_per_pixel, vmem_limit):
    """Largest lane tile (multiple of 128, preferring divisors of hw) whose full
    per-tile working set fits well inside the scoped VMEM limit."""
    budget = (vmem_limit * 3) // 4           # headroom for weights / overheads
    max_t = max(128, (budget // max(bytes_per_pixel, 1)) // 128 * 128)
    if hw <= max_t:
        return hw
    for t in range(max_t, 127, -128):        # prefer a divisor of hw (no ragged tile)
        if hw % t == 0:
            return t
    return max_t                             # ragged last tile: stats are masked


# ------------------------------------------------------------------ pass 1
def _proj_kernel(g_ref, x_ref, wg_ref, wx_ref,
                 g1c_ref, x1c_ref, sg_ref, ssg_ref, sx_ref, ssx_ref,
                 *, hw, tile):
    # bf16 MXU operands (native on all generations), f32 accumulation.
    g1 = jnp.dot(wg_ref[...], g_ref[0].astype(jnp.bfloat16),
                 preferred_element_type=jnp.float32)           # (F_int, T)
    x1 = jnp.dot(wx_ref[...], x_ref[0].astype(jnp.bfloat16),
                 preferred_element_type=jnp.float32)           # (F_int, T)

    # Cache projections so pass 2 never re-reads g/x or re-runs the MXU.
    g1c_ref[0] = g1.astype(jnp.bfloat16)
    x1c_ref[0] = x1.astype(jnp.bfloat16)

    if hw % tile:      # statically skipped on the common divisor-tile path
        t = pl.program_id(1)
        lane = jax.lax.broadcasted_iota(jnp.int32, (1, tile), 1)
        valid = (t * tile + lane) < hw
        g1 = jnp.where(valid, g1, 0.0)
        x1 = jnp.where(valid, x1, 0.0)

    # Per-(n, tile) partial BN statistics; summed in the wrapper so the pixel
    # grid axis stays "parallel".
    sg_ref[0, 0] = jnp.sum(g1, axis=1, keepdims=True)
    ssg_ref[0, 0] = jnp.sum(g1 * g1, axis=1, keepdims=True)
    sx_ref[0, 0] = jnp.sum(x1, axis=1, keepdims=True)
    ssx_ref[0, 0] = jnp.sum(x1 * x1, axis=1, keepdims=True)


# ------------------------------------------------------------------ pass 2
def _psi_kernel(g1c_ref, x1c_ref, scg_ref, scx_ref, sh_ref, wp_ref,
                psi_ref, ps_ref, pss_ref, *, hw, tile):
    g1 = g1c_ref[0].astype(jnp.float32)                        # (F_int, T)
    x1 = x1c_ref[0].astype(jnp.float32)
    a = jnp.maximum(g1 * scg_ref[...] + x1 * scx_ref[...] + sh_ref[...], 0.0)

    # psi 1x1 conv with one output channel: VPU multiply + sublane reduce
    # (avoids a lane-sparse MXU matmul / lane-width-1 HBM store).
    psi = jnp.sum(a * wp_ref[...], axis=0, keepdims=True)      # (1, T)
    psi_ref[0] = psi

    if hw % tile:
        t = pl.program_id(1)
        lane = jax.lax.broadcasted_iota(jnp.int32, (1, tile), 1)
        valid = (t * tile + lane) < hw
        psi = jnp.where(valid, psi, 0.0)

    ps_ref[0, 0] = jnp.sum(psi, axis=1, keepdims=True)
    pss_ref[0, 0] = jnp.sum(psi * psi, axis=1, keepdims=True)


# ------------------------------------------------------------------ pass 3
def _apply_kernel(x_ref, psi_ref, aff_ref, out_ref):
    scale_p = aff_ref[0]                                       # SMEM scalars
    shift_p = aff_ref[1]
    p = jax.nn.sigmoid(psi_ref[0] * scale_p + shift_p)         # (1, T)
    out_ref[0] = x_ref[0] * p                                  # broadcast over C


def attention_block(g, x, params, *, tile=None):
    """g: (N, F_g, H, W) f32, x: (N, F_l, H, W) f32  ->  (N, F_l, H, W) f32."""
    N, F_g, H, W = g.shape
    _, F_l, _, _ = x.shape
    F_int = params["wg"].shape[0]
    HW = H * W

    g3 = g.reshape(N, F_g, HW)          # free reshapes: NCHW layout preserved
    x3 = x.reshape(N, F_l, HW)

    vmem_limit = _vmem_limit_bytes()
    # Per-pixel VMEM bytes of the heaviest pass: double-buffered streams, bf16
    # casts and the (F_int, tile) f32 matmul intermediates are all counted.
    bytes_per_pixel = max(
        10 * (F_g + F_l) + 16 * F_int,   # pass 1
        20 * F_int + 8,                  # pass 2
        16 * F_l + 16,                   # pass 3
    )
    if tile is None:
        tile = _pick_tile_hw(HW, bytes_per_pixel, vmem_limit)
    tile = min(tile, HW)
    n_t = pl.cdiv(HW, tile)

    wg_bf = params["wg"].astype(jnp.bfloat16)
    wx_bf = params["wx"].astype(jnp.bfloat16)

    g_spec = pl.BlockSpec((1, F_g, tile), lambda n, t: (n, 0, t))
    x_spec = pl.BlockSpec((1, F_l, tile), lambda n, t: (n, 0, t))
    mid_spec = pl.BlockSpec((1, F_int, tile), lambda n, t: (n, 0, t))
    psi_spec = pl.BlockSpec((1, 1, tile), lambda n, t: (n, 0, t))
    wg_spec = pl.BlockSpec((F_int, F_g), lambda n, t: (0, 0))
    wx_spec = pl.BlockSpec((F_int, F_l), lambda n, t: (0, 0))
    col_spec = pl.BlockSpec((F_int, 1), lambda n, t: (0, 0))
    cstat_spec = pl.BlockSpec((1, 1, F_int, 1), lambda n, t: (n, t, 0, 0))
    pstat_spec = pl.BlockSpec((1, 1, 1, 1), lambda n, t: (n, t, 0, 0))
    smem_spec = pl.BlockSpec(memory_space=pltpu.MemorySpace.SMEM)

    cparams = pltpu.CompilerParams(
        dimension_semantics=("parallel", "parallel"),
        vmem_limit_bytes=vmem_limit)

    cstat_shape = jax.ShapeDtypeStruct((N, n_t, F_int, 1), jnp.float32)
    pstat_shape = jax.ShapeDtypeStruct((N, n_t, 1, 1), jnp.float32)
    mid_shape = jax.ShapeDtypeStruct((N, F_int, HW), jnp.bfloat16)

    # ---- pass 1: projections (bf16 cache) + per-tile BN partial stats -------
    g1c, x1c, sg, ssg, sx, ssx = pl.pallas_call(
        functools.partial(_proj_kernel, hw=HW, tile=tile),
        out_shape=(mid_shape, mid_shape,
                   cstat_shape, cstat_shape, cstat_shape, cstat_shape),
        grid_spec=pltpu.PrefetchScalarGridSpec(
            num_scalar_prefetch=0,
            grid=(N, n_t),
            in_specs=[g_spec, x_spec, wg_spec, wx_spec],
            out_specs=(mid_spec, mid_spec,
                       cstat_spec, cstat_spec, cstat_spec, cstat_spec),
        ),
        compiler_params=cparams,
    )(g3, x3, wg_bf, wx_bf)

    cnt = jnp.float32(N * HW)

    # TODO(synk): E[y^2]-E[y]^2 in f32 can cancel at very large N*HW; switch the
    # per-tile partials to (count, mean, M2) + Chan-style combine at prod sizes.
    def fold(s, ss, gamma, beta):
        mu = jnp.sum(s, axis=(0, 1)) / cnt                       # (C, 1)
        var = jnp.maximum(jnp.sum(ss, axis=(0, 1)) / cnt - mu * mu, 0.0)
        scale = gamma.reshape(-1, 1) * jax.lax.rsqrt(var + EPS)
        shift = beta.reshape(-1, 1) - mu * scale
        return scale, shift

    # Conv biases (bg/bx/bp) cancel exactly under training-mode BN -> dropped.
    scale_g, shift_g = fold(sg, ssg, params["gamma_g"], params["beta_g"])
    scale_x, shift_x = fold(sx, ssx, params["gamma_x"], params["beta_x"])
    shift_gx = shift_g + shift_x              # one shift for bn(g1) + bn(x1)
    wp_col = params["wp"].reshape(F_int, 1)

    # ---- pass 2: psi_pre = wp . relu(bn(g1)+bn(x1)) + per-tile psi stats -----
    psi_pre, ps, pss = pl.pallas_call(
        functools.partial(_psi_kernel, hw=HW, tile=tile),
        out_shape=(jax.ShapeDtypeStruct((N, 1, HW), jnp.float32),
                   pstat_shape, pstat_shape),
        grid_spec=pltpu.PrefetchScalarGridSpec(
            num_scalar_prefetch=0,
            grid=(N, n_t),
            in_specs=[mid_spec, mid_spec, col_spec, col_spec, col_spec, col_spec],
            out_specs=(psi_spec, pstat_spec, pstat_spec),
        ),
        compiler_params=cparams,
    )(g1c, x1c, scale_g, scale_x, shift_gx, wp_col)

    mu_p = jnp.sum(ps) / cnt
    var_p = jnp.maximum(jnp.sum(pss) / cnt - mu_p * mu_p, 0.0)
    scale_p = params["gamma_p"][0] * jax.lax.rsqrt(var_p + EPS)
    shift_p = params["beta_p"][0] - mu_p * scale_p
    psi_aff = jnp.stack([scale_p, shift_p]).astype(jnp.float32)   # (2,) -> SMEM

    # ---- pass 3: out = x * sigmoid(scale_p * psi_pre + shift_p) --------------
    out3 = pl.pallas_call(
        _apply_kernel,
        out_shape=jax.ShapeDtypeStruct((N, F_l, HW), jnp.float32),
        grid_spec=pltpu.PrefetchScalarGridSpec(
            num_scalar_prefetch=0,
            grid=(N, n_t),
            in_specs=[x_spec, psi_spec, smem_spec],
            out_specs=x_spec,
        ),
        compiler_params=cparams,
    )(x3, psi_pre, psi_aff)

    return out3.reshape(N, F_l, H, W)


def make_params(key, F_g, F_l, F_int):
    ks = jax.random.split(key, 12)

    def u(k, shape, fan_in):
        s = 1.0 / (fan_in ** 0.5)
        return jax.random.uniform(k, shape, jnp.float32, -s, s)

    # Conv2d 1x1 weights in PyTorch (C_out, C_in) layout.  Biases are present
    # (reference uses them) but cancel under training-mode BN in the kernels.
    return {
        "wg": u(ks[0], (F_int, F_g), F_g),
        "bg": u(ks[1], (F_int,), F_g),
        "gamma_g": 1.0 + 0.1 * jax.random.normal(ks[2], (F_int,), jnp.float32),
        "beta_g": 0.1 * jax.random.normal(ks[3], (F_int,), jnp.float32),
        "wx": u(ks[4], (F_int, F_l), F_l),
        "bx": u(ks[5], (F_int,), F_l),
        "gamma_x": 1.0 + 0.1 * jax.random.normal(ks[6], (F_int,), jnp.float32),
        "beta_x": 0.1 * jax.random.normal(ks[7], (F_int,), jnp.float32),
        "wp": u(ks[8], (1, F_int), F_int),
        "bp": u(ks[9], (1,), F_int),
        "gamma_p": 1.0 + 0.1 * jax.random.normal(ks[10], (1,), jnp.float32),
        "beta_p": 0.1 * jax.random.normal(ks[11], (1,), jnp.float32),
    }


def _bn_train_nchw(y, gamma, beta):
    mu = jnp.mean(y, axis=(0, 2, 3), keepdims=True)
    var = jnp.mean((y - mu) ** 2, axis=(0, 2, 3), keepdims=True)
    return ((y - mu) * jax.lax.rsqrt(var + EPS) * gamma.reshape(1, -1, 1, 1)
            + beta.reshape(1, -1, 1, 1))


def reference(g, x, params):
    """Pure-JAX f32 mirror of the PyTorch forward (training-mode BN, biases kept)."""
    g1 = jnp.einsum("oc,nchw->nohw", params["wg"], g) + params["bg"].reshape(1, -1, 1, 1)
    g1 = _bn_train_nchw(g1, params["gamma_g"], params["beta_g"])
    x1 = jnp.einsum("oc,nchw->nohw", params["wx"], x) + params["bx"].reshape(1, -1, 1, 1)
    x1 = _bn_train_nchw(x1, params["gamma_x"], params["beta_x"])
    a = jnp.maximum(g1 + x1, 0.0)
    p = jnp.einsum("oc,nchw->nohw", params["wp"], a) + params["bp"].reshape(1, -1, 1, 1)
    p = _bn_train_nchw(p, params["gamma_p"], params["beta_p"])
    p = jax.nn.sigmoid(p)
    return x * p


def _run_case(key, *, N, F_g, F_l, F_int, H, W, tile=None):
    k_g, k_x, k_p = jax.random.split(key, 3)
    g = jax.random.normal(k_g, (N, F_g, H, W), jnp.float32)
    x = jax.random.normal(k_x, (N, F_l, H, W), jnp.float32)
    params = make_params(k_p, F_g, F_l, F_int)

    fwd = jax.jit(functools.partial(attention_block, tile=tile))
    out = jax.block_until_ready(fwd(g, x, params))
    ref = reference(g, x, params)

    assert out.shape == (N, F_l, H, W)
    # Kernel uses bf16 MXU operands and a bf16 intermediate cache (per perf
    # review); the reference is all-f32 -> bf16-level tolerance.
    err = float(jnp.max(jnp.abs(out - ref)))
    assert jnp.allclose(out, ref, atol=2e-2, rtol=5e-2), (
        f"mismatch vs reference (max abs err {err})")


if __name__ == "__main__":
    k0, k1 = jax.random.split(jax.random.PRNGKey(0))
    # Main case: auto tile, HW a multiple of 128 (unmasked fast path).
    _run_case(k0, N=2, F_g=8, F_l=8, F_int=4, H=16, W=16)
    # Ragged case: HW = 144 with a forced 128 tile exercises the masked-stats /
    # dropped-OOB-lanes path flagged in the review (and F_g != F_l).
    _run_case(k1, N=1, F_g=12, F_l=8, F_int=6, H=12, W=12, tile=128)
    print("KERNEL_OK")
</pallas_src>

<mosaic_0001>
module attributes {stable_mosaic.version = 11 : i64} {
  func.func @_apply_kernel(%arg0: i32, %arg1: i32, %arg2: memref<1x8x256xf32, #tpu.memory_space<vmem>>, %arg3: memref<1x1x256xf32, #tpu.memory_space<vmem>>, %arg4: memref<2xf32, #tpu.memory_space<smem>>, %arg5: memref<1x8x256xf32, #tpu.memory_space<vmem>>) attributes {dimension_semantics = [#tpu.dimension_semantics<parallel>, #tpu.dimension_semantics<parallel>], iteration_bounds = array<i64: 2, 1>, scalar_prefetch = 0 : i64, scratch_operands = 0 : i64, tpu.core_type = #tpu.core_type<tc>, window_params = [{transform_indices = @transform_0, window_bounds = array<i64: 1, 8, 256>}, {transform_indices = @transform_1, window_bounds = array<i64: 1, 1, 256>}, {transform_indices = @transform_2, window_bounds = array<i64: 2>}, {transform_indices = @transform_3, window_bounds = array<i64: 1, 8, 256>}]} {
    %c0 = arith.constant 0 : index
    %0 = memref.load %arg4[%c0] : memref<2xf32, #tpu.memory_space<smem>>
    %c1 = arith.constant 1 : index
    %1 = memref.load %arg4[%c1] : memref<2xf32, #tpu.memory_space<smem>>
    %c0_0 = arith.constant 0 : index
    %c0_1 = arith.constant 0 : index
    %c0_2 = arith.constant 0 : index
    %2 = vector.load %arg3[%c0_0, %c0_1, %c0_2] : memref<1x1x256xf32, #tpu.memory_space<vmem>>, vector<1x1x256xf32>
    %3 = vector.shape_cast %2 : vector<1x1x256xf32> to vector<1x256xf32>
    %4 = vector.broadcast %0 : f32 to vector<1x256xf32>
    %5 = arith.mulf %3, %4 : vector<1x256xf32>
    %6 = vector.broadcast %1 : f32 to vector<1x256xf32>
    %7 = arith.addf %5, %6 : vector<1x256xf32>
    %8 = arith.negf %7 : vector<1x256xf32>
    %9 = math.exp %8 : vector<1x256xf32>
    %cst = arith.constant 1.000000e+00 : f32
    %10 = vector.broadcast %cst : f32 to vector<1x256xf32>
    %11 = arith.addf %10, %9 : vector<1x256xf32>
    %12 = arith.divf %10, %11 : vector<1x256xf32>
    %c0_3 = arith.constant 0 : index
    %c0_4 = arith.constant 0 : index
    %c0_5 = arith.constant 0 : index
    %13 = vector.load %arg2[%c0_3, %c0_4, %c0_5] : memref<1x8x256xf32, #tpu.memory_space<vmem>>, vector<1x8x256xf32>
    %14 = vector.shape_cast %13 : vector<1x8x256xf32> to vector<8x256xf32>
    %15 = vector.broadcast %12 : vector<1x256xf32> to vector<8x256xf32>
    %16 = arith.mulf %14, %15 : vector<8x256xf32>
    %c0_6 = arith.constant 0 : index
    %c0_7 = arith.constant 0 : index
    %c0_8 = arith.constant 0 : index
    %17 = vector.load %arg5[%c0_6, %c0_7, %c0_8] : memref<1x8x256xf32, #tpu.memory_space<vmem>>, vector<1x8x256xf32>
    %18 = vector.shape_cast %17 : vector<1x8x256xf32> to vector<8x256xf32>
    %19 = vector.shape_cast %16 : vector<8x256xf32> to vector<1x8x256xf32>
    tpu.vector_store %arg5[%c0_6, %c0_7, %c0_8], %19 {strides = array<i32>} : memref<1x8x256xf32, #tpu.memory_space<vmem>>, vector<1x8x256xf32>,
    return
  }
  func.func @transform_0(%arg0: i32, %arg1: i32) -> (i32, i32, i32) {
    %c0_i32 = arith.constant 0 : i32
    %c0_i32_0 = arith.constant 0 : i32
    return %arg0, %c0_i32, %arg1 : i32, i32, i32
  }
  func.func @transform_1(%arg0: i32, %arg1: i32) -> (i32, i32, i32) {
    %c0_i32 = arith.constant 0 : i32
    %c0_i32_0 = arith.constant 0 : i32
    return %arg0, %c0_i32, %arg1 : i32, i32, i32
  }
  func.func @transform_2(%arg0: i32, %arg1: i32) -> i32 {
    %c0_i32 = arith.constant 0 : i32
    %c0_i32_0 = arith.constant 0 : i32
    return %c0_i32 : i32
  }
  func.func @transform_3(%arg0: i32, %arg1: i32) -> (i32, i32, i32) {
    %c0_i32 = arith.constant 0 : i32
    %c0_i32_0 = arith.constant 0 : i32
    return %arg0, %c0_i32, %arg1 : i32, i32, i32
  }
}

module attributes {stable_mosaic.version = 11 : i64} {
  func.func @_psi_kernel(%arg0: i32, %arg1: i32, %arg2: memref<1x4x256xbf16, #tpu.memory_space<vmem>>, %arg3: memref<1x4x256xbf16, #tpu.memory_space<vmem>>, %arg4: memref<4x1xf32, #tpu.memory_space<vmem>>, %arg5: memref<4x1xf32, #tpu.memory_space<vmem>>, %arg6: memref<4x1xf32, #tpu.memory_space<vmem>>, %arg7: memref<4x1xf32, #tpu.memory_space<vmem>>, %arg8: memref<1x1x256xf32, #tpu.memory_space<vmem>>, %arg9: memref<1x1x1x1xf32, #tpu.memory_space<vmem>>, %arg10: memref<1x1x1x1xf32, #tpu.memory_space<vmem>>) attributes {dimension_semantics = [#tpu.dimension_semantics<parallel>, #tpu.dimension_semantics<parallel>], iteration_bounds = array<i64: 2, 1>, scalar_prefetch = 0 : i64, scratch_operands = 0 : i64, tpu.core_type = #tpu.core_type<tc>, window_params = [{transform_indices = @transform_0, window_bounds = array<i64: 1, 4, 256>}, {transform_indices = @transform_1, window_bounds = array<i64: 1, 4, 256>}, {pipeline_mode = #tpu.pipeline_mode<synchronous>, transform_indices = @transform_2, window_bounds = array<i64: 4, 1>}, {pipeline_mode = #tpu.pipeline_mode<synchronous>, transform_indices = @transform_3, window_bounds = array<i64: 4, 1>}, {pipeline_mode = #tpu.pipeline_mode<synchronous>, transform_indices = @transform_4, window_bounds = array<i64: 4, 1>}, {pipeline_mode = #tpu.pipeline_mode<synchronous>, transform_indices = @transform_5, window_bounds = array<i64: 4, 1>}, {transform_indices = @transform_6, window_bounds = array<i64: 1, 1, 256>}, {transform_indices = @transform_7, window_bounds = array<i64: 1, 1, 1, 1>}, {transform_indices = @transform_8, window_bounds = array<i64: 1, 1, 1, 1>}]} {
    %c0 = arith.constant 0 : index
    %c0_0 = arith.constant 0 : index
    %c0_1 = arith.constant 0 : index
    %0 = vector.load %arg2[%c0, %c0_0, %c0_1] : memref<1x4x256xbf16, #tpu.memory_space<vmem>>, vector<1x4x256xbf16>
    %1 = vector.shape_cast %0 : vector<1x4x256xbf16> to vector<4x256xbf16>
    %2 = arith.extf %1 : vector<4x256xbf16> to vector<4x256xf32>
    %c0_2 = arith.constant 0 : index
    %c0_3 = arith.constant 0 : index
    %c0_4 = arith.constant 0 : index
    %3 = vector.load %arg3[%c0_2, %c0_3, %c0_4] : memref<1x4x256xbf16, #tpu.memory_space<vmem>>, vector<1x4x256xbf16>
    %4 = vector.shape_cast %3 : vector<1x4x256xbf16> to vector<4x256xbf16>
    %5 = arith.extf %4 : vector<4x256xbf16> to vector<4x256xf32>
    %c0_5 = arith.constant 0 : index
    %c0_6 = arith.constant 0 : index
    %6 = vector.load %arg4[%c0_5, %c0_6] : memref<4x1xf32, #tpu.memory_space<vmem>>, vector<4x1xf32>
    %7 = vector.broadcast %6 : vector<4x1xf32> to vector<4x256xf32>
    %8 = arith.mulf %2, %7 : vector<4x256xf32>
    %c0_7 = arith.constant 0 : index
    %c0_8 = arith.constant 0 : index
    %9 = vector.load %arg5[%c0_7, %c0_8] : memref<4x1xf32, #tpu.memory_space<vmem>>, vector<4x1xf32>
    %10 = vector.broadcast %9 : vector<4x1xf32> to vector<4x256xf32>
    %11 = arith.mulf %5, %10 : vector<4x256xf32>
    %12 = arith.addf %8, %11 : vector<4x256xf32>
    %c0_9 = arith.constant 0 : index
    %c0_10 = arith.constant 0 : index
    %13 = vector.load %arg6[%c0_9, %c0_10] : memref<4x1xf32, #tpu.memory_space<vmem>>, vector<4x1xf32>
    %14 = vector.broadcast %13 : vector<4x1xf32> to vector<4x256xf32>
    %15 = arith.addf %12, %14 : vector<4x256xf32>
    %cst = arith.constant 0.000000e+00 : f32
    %16 = vector.broadcast %cst : f32 to vector<4x256xf32>
    %17 = arith.maximumf %15, %16 : vector<4x256xf32>
    %c0_11 = arith.constant 0 : index
    %c0_12 = arith.constant 0 : index
    %18 = vector.load %arg7[%c0_11, %c0_12] : memref<4x1xf32, #tpu.memory_space<vmem>>, vector<4x1xf32>
    %19 = vector.broadcast %18 : vector<4x1xf32> to vector<4x256xf32>
    %20 = arith.mulf %17, %19 : vector<4x256xf32>
    %cst_13 = arith.constant dense<0.000000e+00> : vector<256xf32>
    %21 = vector.multi_reduction <add>, %20, %cst_13 [0] : vector<4x256xf32> to vector<256xf32>
    %22 = vector.shape_cast %21 : vector<256xf32> to vector<1x256xf32>
    %c0_14 = arith.constant 0 : index
    %c0_15 = arith.constant 0 : index
    %c0_16 = arith.constant 0 : index
    %23 = vector.load %arg8[%c0_14, %c0_15, %c0_16] : memref<1x1x256xf32, #tpu.memory_space<vmem>>, vector<1x1x256xf32>
    %24 = vector.shape_cast %23 : vector<1x1x256xf32> to vector<1x256xf32>
    %25 = vector.shape_cast %22 : vector<1x256xf32> to vector<1x1x256xf32>
    tpu.vector_store %arg8[%c0_14, %c0_15, %c0_16], %25 {strides = array<i32>} : memref<1x1x256xf32, #tpu.memory_space<vmem>>, vector<1x1x256xf32>,
    %cst_17 = arith.constant dense<0.000000e+00> : vector<1xf32>
    %26 = vector.multi_reduction <add>, %22, %cst_17 [1] : vector<1x256xf32> to vector<1xf32>
    %27 = vector.shape_cast %26 : vector<1xf32> to vector<1x1xf32>
    %c0_18 = arith.constant 0 : index
    %c0_19 = arith.constant 0 : index
    %c0_20 = arith.constant 0 : index
    %c0_21 = arith.constant 0 : index
    %28 = vector.load %arg9[%c0_18, %c0_19, %c0_20, %c0_21] : memref<1x1x1x1xf32, #tpu.memory_space<vmem>>, vector<1x1x1x1xf32>
    %29 = vector.shape_cast %28 : vector<1x1x1x1xf32> to vector<1x1xf32>
    %30 = vector.shape_cast %27 : vector<1x1xf32> to vector<1x1x1x1xf32>
    tpu.vector_store %arg9[%c0_18, %c0_19, %c0_20, %c0_21], %30 {strides = array<i32>} : memref<1x1x1x1xf32, #tpu.memory_space<vmem>>, vector<1x1x1x1xf32>,
    %31 = arith.mulf %22, %22 : vector<1x256xf32>
    %cst_22 = arith.constant dense<0.000000e+00> : vector<1xf32>
    %32 = vector.multi_reduction <add>, %31, %cst_22 [1] : vector<1x256xf32> to vector<1xf32>
    %33 = vector.shape_cast %32 : vector<1xf32> to vector<1x1xf32>
    %c0_23 = arith.constant 0 : index
    %c0_24 = arith.constant 0 : index
    %c0_25 = arith.constant 0 : index
    %c0_26 = arith.constant 0 : index
    %34 = vector.load %arg10[%c0_23, %c0_24, %c0_25, %c0_26] : memref<1x1x1x1xf32, #tpu.memory_space<vmem>>, vector<1x1x1x1xf32>
    %35 = vector.shape_cast %34 : vector<1x1x1x1xf32> to vector<1x1xf32>
    %36 = vector.shape_cast %33 : vector<1x1xf32> to vector<1x1x1x1xf32>
    tpu.vector_store %arg10[%c0_23, %c0_24, %c0_25, %c0_26], %36 {strides = array<i32>} : memref<1x1x1x1xf32, #tpu.memory_space<vmem>>, vector<1x1x1x1xf32>,
    return
  }
  func.func @transform_0(%arg0: i32, %arg1: i32) -> (i32, i32, i32) {
    %c0_i32 = arith.constant 0 : i32
    %c0_i32_0 = arith.constant 0 : i32
    return %arg0, %c0_i32, %arg1 : i32, i32, i32
  }
  func.func @transform_1(%arg0: i32, %arg1: i32) -> (i32, i32, i32) {
    %c0_i32 = arith.constant 0 : i32
    %c0_i32_0 = arith.constant 0 : i32
    return %arg0, %c0_i32, %arg1 : i32, i32, i32
  }
  func.func @transform_2(%arg0: i32, %arg1: i32) -> (i32, i32) {
    %c0_i32 = arith.constant 0 : i32
    %c0_i32_0 = arith.constant 0 : i32
    %c0_i32_1 = arith.constant 0 : i32
    return %c0_i32, %c0_i32_0 : i32, i32
  }
  func.func @transform_3(%arg0: i32, %arg1: i32) -> (i32, i32) {
    %c0_i32 = arith.constant 0 : i32
    %c0_i32_0 = arith.constant 0 : i32
    %c0_i32_1 = arith.constant 0 : i32
    return %c0_i32, %c0_i32_0 : i32, i32
  }
  func.func @transform_4(%arg0: i32, %arg1: i32) -> (i32, i32) {
    %c0_i32 = arith.constant 0 : i32
    %c0_i32_0 = arith.constant 0 : i32
    %c0_i32_1 = arith.constant 0 : i32
    return %c0_i32, %c0_i32_0 : i32, i32
  }
  func.func @transform_5(%arg0: i32, %arg1: i32) -> (i32, i32) {
    %c0_i32 = arith.constant 0 : i32
    %c0_i32_0 = arith.constant 0 : i32
    %c0_i32_1 = arith.constant 0 : i32
    return %c0_i32, %c0_i32_0 : i32, i32
  }
  func.func @transform_6(%arg0: i32, %arg1: i32) -> (i32, i32, i32) {
    %c0_i32 = arith.constant 0 : i32
    %c0_i32_0 = arith.constant 0 : i32
    return %arg0, %c0_i32, %arg1 : i32, i32, i32
  }
  func.func @transform_7(%arg0: i32, %arg1: i32) -> (i32, i32, i32, i32) {
    %c0_i32 = arith.constant 0 : i32
    %c0_i32_0 = arith.constant 0 : i32
    %c0_i32_1 = arith.constant 0 : i32
    return %arg0, %arg1, %c0_i32, %c0_i32_0 : i32, i32, i32, i32
  }
  func.func @transform_8(%arg0: i32, %arg1: i32) -> (i32, i32, i32, i32) {
    %c0_i32 = arith.constant 0 : i32
    %c0_i32_0 = arith.constant 0 : i32
    %c0_i32_1 = arith.constant 0 : i32
    return %arg0, %arg1, %c0_i32, %c0_i32_0 : i32, i32, i32, i32
  }
}

module attributes {stable_mosaic.version = 11 : i64} {
  func.func @_proj_kernel(%arg0: i32, %arg1: i32, %arg2: memref<1x8x256xf32, #tpu.memory_space<vmem>>, %arg3: memref<1x8x256xf32, #tpu.memory_space<vmem>>, %arg4: memref<4x8xbf16, #tpu.memory_space<vmem>>, %arg5: memref<4x8xbf16, #tpu.memory_space<vmem>>, %arg6: memref<1x4x256xbf16, #tpu.memory_space<vmem>>, %arg7: memref<1x4x256xbf16, #tpu.memory_space<vmem>>, %arg8: memref<1x1x4x1xf32, #tpu.memory_space<vmem>>, %arg9: memref<1x1x4x1xf32, #tpu.memory_space<vmem>>, %arg10: memref<1x1x4x1xf32, #tpu.memory_space<vmem>>, %arg11: memref<1x1x4x1xf32, #tpu.memory_space<vmem>>) attributes {dimension_semantics = [#tpu.dimension_semantics<parallel>, #tpu.dimension_semantics<parallel>], iteration_bounds = array<i64: 2, 1>, scalar_prefetch = 0 : i64, scratch_operands = 0 : i64, tpu.core_type = #tpu.core_type<tc>, window_params = [{transform_indices = @transform_0, window_bounds = array<i64: 1, 8, 256>}, {transform_indices = @transform_1, window_bounds = array<i64: 1, 8, 256>}, {pipeline_mode = #tpu.pipeline_mode<synchronous>, transform_indices = @transform_2, window_bounds = array<i64: 4, 8>}, {pipeline_mode = #tpu.pipeline_mode<synchronous>, transform_indices = @transform_3, window_bounds = array<i64: 4, 8>}, {transform_indices = @transform_4, window_bounds = array<i64: 1, 4, 256>}, {transform_indices = @transform_5, window_bounds = array<i64: 1, 4, 256>}, {transform_indices = @transform_6, window_bounds = array<i64: 1, 1, 4, 1>}, {transform_indices = @transform_7, window_bounds = array<i64: 1, 1, 4, 1>}, {transform_indices = @transform_8, window_bounds = array<i64: 1, 1, 4, 1>}, {transform_indices = @transform_9, window_bounds = array<i64: 1, 1, 4, 1>}]} {
    %c0 = arith.constant 0 : index
    %c0_0 = arith.constant 0 : index
    %0 = vector.load %arg4[%c0, %c0_0] : memref<4x8xbf16, #tpu.memory_space<vmem>>, vector<4x8xbf16>
    %c0_1 = arith.constant 0 : index
    %c0_2 = arith.constant 0 : index
    %c0_3 = arith.constant 0 : index
    %1 = vector.load %arg2[%c0_1, %c0_2, %c0_3] : memref<1x8x256xf32, #tpu.memory_space<vmem>>, vector<1x8x256xf32>
    %2 = vector.shape_cast %1 : vector<1x8x256xf32> to vector<8x256xf32>
    %3 = arith.truncf %2 : vector<8x256xf32> to vector<8x256xbf16>
    %cst = arith.constant dense<0.000000e+00> : vector<4x256xf32>
    %4 = tpu.matmul %0, %3, %cst {dimension_numbers = #tpu.dot_dimension_numbers<[1], [0], [0], [1], [0, 0, 1, 1], [], []>} : vector<4x8xbf16>, vector<8x256xbf16>, vector<4x256xf32> -> vector<4x256xf32>
    %c0_4 = arith.constant 0 : index
    %c0_5 = arith.constant 0 : index
    %5 = vector.load %arg5[%c0_4, %c0_5] : memref<4x8xbf16, #tpu.memory_space<vmem>>, vector<4x8xbf16>
    %c0_6 = arith.constant 0 : index
    %c0_7 = arith.constant 0 : index
    %c0_8 = arith.constant 0 : index
    %6 = vector.load %arg3[%c0_6, %c0_7, %c0_8] : memref<1x8x256xf32, #tpu.memory_space<vmem>>, vector<1x8x256xf32>
    %7 = vector.shape_cast %6 : vector<1x8x256xf32> to vector<8x256xf32>
    %8 = arith.truncf %7 : vector<8x256xf32> to vector<8x256xbf16>
    %cst_9 = arith.constant dense<0.000000e+00> : vector<4x256xf32>
    %9 = tpu.matmul %5, %8, %cst_9 {dimension_numbers = #tpu.dot_dimension_numbers<[1], [0], [0], [1], [0, 0, 1, 1], [], []>} : vector<4x8xbf16>, vector<8x256xbf16>, vector<4x256xf32> -> vector<4x256xf32>
    %10 = arith.truncf %4 : vector<4x256xf32> to vector<4x256xbf16>
    %c0_10 = arith.constant 0 : index
    %c0_11 = arith.constant 0 : index
    %c0_12 = arith.constant 0 : index
    %11 = vector.load %arg6[%c0_10, %c0_11, %c0_12] : memref<1x4x256xbf16, #tpu.memory_space<vmem>>, vector<1x4x256xbf16>
    %12 = vector.shape_cast %11 : vector<1x4x256xbf16> to vector<4x256xbf16>
    %13 = vector.shape_cast %10 : vector<4x256xbf16> to vector<1x4x256xbf16>
    tpu.vector_store %arg6[%c0_10, %c0_11, %c0_12], %13 {strides = array<i32>} : memref<1x4x256xbf16, #tpu.memory_space<vmem>>, vector<1x4x256xbf16>,
    %14 = arith.truncf %9 : vector<4x256xf32> to vector<4x256xbf16>
    %c0_13 = arith.constant 0 : index
    %c0_14 = arith.constant 0 : index
    %c0_15 = arith.constant 0 : index
    %15 = vector.load %arg7[%c0_13, %c0_14, %c0_15] : memref<1x4x256xbf16, #tpu.memory_space<vmem>>, vector<1x4x256xbf16>
    %16 = vector.shape_cast %15 : vector<1x4x256xbf16> to vector<4x256xbf16>
    %17 = vector.shape_cast %14 : vector<4x256xbf16> to vector<1x4x256xbf16>
    tpu.vector_store %arg7[%c0_13, %c0_14, %c0_15], %17 {strides = array<i32>} : memref<1x4x256xbf16, #tpu.memory_space<vmem>>, vector<1x4x256xbf16>,
    %cst_16 = arith.constant dense<0.000000e+00> : vector<4xf32>
    %18 = vector.multi_reduction <add>, %4, %cst_16 [1] : vector<4x256xf32> to vector<4xf32>
    %19 = vector.shape_cast %18 : vector<4xf32> to vector<4x1xf32>
    %c0_17 = arith.constant 0 : index
    %c0_18 = arith.constant 0 : index
    %c0_19 = arith.constant 0 : index
    %c0_20 = arith.constant 0 : index
    %20 = vector.load %arg8[%c0_17, %c0_18, %c0_19, %c0_20] : memref<1x1x4x1xf32, #tpu.memory_space<vmem>>, vector<1x1x4x1xf32>
    %21 = vector.shape_cast %20 : vector<1x1x4x1xf32> to vector<4x1xf32>
    %22 = vector.shape_cast %19 : vector<4x1xf32> to vector<1x1x4x1xf32>
    tpu.vector_store %arg8[%c0_17, %c0_18, %c0_19, %c0_20], %22 {strides = array<i32>} : memref<1x1x4x1xf32, #tpu.memory_space<vmem>>, vector<1x1x4x1xf32>,
    %23 = arith.mulf %4, %4 : vector<4x256xf32>
    %cst_21 = arith.constant dense<0.000000e+00> : vector<4xf32>
    %24 = vector.multi_reduction <add>, %23, %cst_21 [1] : vector<4x256xf32> to vector<4xf32>
    %25 = vector.shape_cast %24 : vector<4xf32> to vector<4x1xf32>
    %c0_22 = arith.constant 0 : index
    %c0_23 = arith.constant 0 : index
    %c0_24 = arith.constant 0 : index
    %c0_25 = arith.constant 0 : index
    %26 = vector.load %arg9[%c0_22, %c0_23, %c0_24, %c0_25] : memref<1x1x4x1xf32, #tpu.memory_space<vmem>>, vector<1x1x4x1xf32>
    %27 = vector.shape_cast %26 : vector<1x1x4x1xf32> to vector<4x1xf32>
    %28 = vector.shape_cast %25 : vector<4x1xf32> to vector<1x1x4x1xf32>
    tpu.vector_store %arg9[%c0_22, %c0_23, %c0_24, %c0_25], %28 {strides = array<i32>} : memref<1x1x4x1xf32, #tpu.memory_space<vmem>>, vector<1x1x4x1xf32>,
    %cst_26 = arith.constant dense<0.000000e+00> : vector<4xf32>
    %29 = vector.multi_reduction <add>, %9, %cst_26 [1] : vector<4x256xf32> to vector<4xf32>
    %30 = vector.shape_cast %29 : vector<4xf32> to vector<4x1xf32>
    %c0_27 = arith.constant 0 : index
    %c0_28 = arith.constant 0 : index
    %c0_29 = arith.constant 0 : index
    %c0_30 = arith.constant 0 : index
    %31 = vector.load %arg10[%c0_27, %c0_28, %c0_29, %c0_30] : memref<1x1x4x1xf32, #tpu.memory_space<vmem>>, vector<1x1x4x1xf32>
    %32 = vector.shape_cast %31 : vector<1x1x4x1xf32> to vector<4x1xf32>
    %33 = vector.shape_cast %30 : vector<4x1xf32> to vector<1x1x4x1xf32>
    tpu.vector_store %arg10[%c0_27, %c0_28, %c0_29, %c0_30], %33 {strides = array<i32>} : memref<1x1x4x1xf32, #tpu.memory_space<vmem>>, vector<1x1x4x1xf32>,
    %34 = arith.mulf %9, %9 : vector<4x256xf32>
    %cst_31 = arith.constant dense<0.000000e+00> : vector<4xf32>
    %35 = vector.multi_reduction <add>, %34, %cst_31 [1] : vector<4x256xf32> to vector<4xf32>
    %36 = vector.shape_cast %35 : vector<4xf32> to vector<4x1xf32>
    %c0_32 = arith.constant 0 : index
    %c0_33 = arith.constant 0 : index
    %c0_34 = arith.constant 0 : index
    %c0_35 = arith.constant 0 : index
    %37 = vector.load %arg11[%c0_32, %c0_33, %c0_34, %c0_35] : memref<1x1x4x1xf32, #tpu.memory_space<vmem>>, vector<1x1x4x1xf32>
    %38 = vector.shape_cast %37 : vector<1x1x4x1xf32> to vector<4x1xf32>
    %39 = vector.shape_cast %36 : vector<4x1xf32> to vector<1x1x4x1xf32>
    tpu.vector_store %arg11[%c0_32, %c0_33, %c0_34, %c0_35], %39 {strides = array<i32>} : memref<1x1x4x1xf32, #tpu.memory_space<vmem>>, vector<1x1x4x1xf32>,
    return
  }
  func.func @transform_0(%arg0: i32, %arg1: i32) -> (i32, i32, i32) {
    %c0_i32 = arith.constant 0 : i32
    %c0_i32_0 = arith.constant 0 : i32
    return %arg0, %c0_i32, %arg1 : i32, i32, i32
  }
  func.func @transform_1(%arg0: i32, %arg1: i32) -> (i32, i32, i32) {
    %c0_i32 = arith.constant 0 : i32
    %c0_i32_0 = arith.constant 0 : i32
    return %arg0, %c0_i32, %arg1 : i32, i32, i32
  }
  func.func @transform_2(%arg0: i32, %arg1: i32) -> (i32, i32) {
    %c0_i32 = arith.constant 0 : i32
    %c0_i32_0 = arith.constant 0 : i32
    %c0_i32_1 = arith.constant 0 : i32
    return %c0_i32, %c0_i32_0 : i32, i32
  }
  func.func @transform_3(%arg0: i32, %arg1: i32) -> (i32, i32) {
    %c0_i32 = arith.constant 0 : i32
    %c0_i32_0 = arith.constant 0 : i32
    %c0_i32_1 = arith.constant 0 : i32
    return %c0_i32, %c0_i32_0 : i32, i32
  }
  func.func @transform_4(%arg0: i32, %arg1: i32) -> (i32, i32, i32) {
    %c0_i32 = arith.constant 0 : i32
    %c0_i32_0 = arith.constant 0 : i32
    return %arg0, %c0_i32, %arg1 : i32, i32, i32
  }
  func.func @transform_5(%arg0: i32, %arg1: i32) -> (i32, i32, i32) {
    %c0_i32 = arith.constant 0 : i32
    %c0_i32_0 = arith.constant 0 : i32
    return %arg0, %c0_i32, %arg1 : i32, i32, i32
  }
  func.func @transform_6(%arg0: i32, %arg1: i32) -> (i32, i32, i32, i32) {
    %c0_i32 = arith.constant 0 : i32
    %c0_i32_0 = arith.constant 0 : i32
    %c0_i32_1 = arith.constant 0 : i32
    return %arg0, %arg1, %c0_i32, %c0_i32_0 : i32, i32, i32, i32
  }
  func.func @transform_7(%arg0: i32, %arg1: i32) -> (i32, i32, i32, i32) {
    %c0_i32 = arith.constant 0 : i32
    %c0_i32_0 = arith.constant 0 : i32
    %c0_i32_1 = arith.constant 0 : i32
    return %arg0, %arg1, %c0_i32, %c0_i32_0 : i32, i32, i32, i32
  }
  func.func @transform_8(%arg0: i32, %arg1: i32) -> (i32, i32, i32, i32) {
    %c0_i32 = arith.constant 0 : i32
    %c0_i32_0 = arith.constant 0 : i32
    %c0_i32_1 = arith.constant 0 : i32
    return %arg0, %arg1, %c0_i32, %c0_i32_0 : i32, i32, i32, i32
  }
  func.func @transform_9(%arg0: i32, %arg1: i32) -> (i32, i32, i32, i32) {
    %c0_i32 = arith.constant 0 : i32
    %c0_i32_0 = arith.constant 0 : i32
    %c0_i32_1 = arith.constant 0 : i32
    return %arg0, %arg1, %c0_i32, %c0_i32_0 : i32, i32, i32, i32
  }
}

</mosaic_0001>

<llo_original>
// kernel: attention_block.5
$region0: #{attention_block.5}
  #allocation0 [shape = 'u32[]', space=smem, size = 0x4, offset = 0x4, fixed_abs, tag = 'smem constant byte address 0x4 - core index']
  #allocation1 [shape = 'u32[144,128]{1,0:T(1,128)}', space=vmem, size = 0x12000, scoped, tag = 'internal scratch']
  %s0 = inlined_call_operand.vmem [shape: f32[2,8,256], index: 0, kind: input, shape index: {}]
  %s1 = inlined_call_operand.vmem [shape: f32[2,1,256], index: 1, kind: input, shape index: {}]
  %s2 = inlined_call_operand.vmem [shape: f32[2], index: 2, kind: input, shape index: {}]
  %s3 = inlined_call_operand.vmem [shape: f32[2,8,256], index: 3, kind: output, shape index: {}]
  %s4 = sld [smem:[#allocation0]]
  $region49: #{attention_block.5} parent=0
    _
  %s6 = ssub.s32 1, %s4
  %s7 = scalar_select 0, %s6, %s4
  $region1: #{attention_block.5} parent=0
    #allocation2 [shape = 'u8[512]{0}', space=smem, size = 0x200, scoped, tag = 'input window, operand 2, single buffered']
    #allocation3 [shape = 's32[2]{0}', space=sflag, size = 0x8, scoped, tag = 'scoped memory for attention_block.5']
    %8 = vsyncpa [#allocation3], 0
    loop: start=0, step=1, limit=4
    $region2: #{attention_block.5} parent=1 // loop_pre_header
      _
    $region3: #{attention_block.5} parent=1 // loop_header
      %s10 = sphi 0, %s14
      %p11 = scmp.ge.s32.totalorder %s10, 4
      %s17 = sphi 0, %s29
      %s18 = sphi 0, %s25
      %s19 = sphi 0, %s17
      %s20 = sphi 0, %s18
      %s21 = sphi 0, %s19
      %s22 = sphi 0, %s20
      %s34 = sphi 0, %s36
      %s37 = sphi 0, %s34
      %s38 = sphi 0, %s37
      %s54 = sphi 0, %s38
      %s62 = sphi 0, %s64
      %s65 = sphi 0, %s62
      %s66 = sphi 0, %s65
      %s82 = sphi 0, %s66
      %s86 = sphi 0, %s86
      %s88 = sphi 0, %s86
      %s89 = sphi 0, %s88
      %s103 = sphi 0, %s89
      %s111 = sphi 0, %s113
      %s114 = sphi 0, %s111
      %s115 = sphi 0, %s114
      %s131 = sphi 0, %s115
    $region4: #{attention_block.5} parent=1 // loop_header_branch
      %13 = sbr.rel (%p11) target = $region8
    $region5: #{attention_block.5} parent=1 // loop_body
      %s15 = ssub.s32 %s10, 1
      %s16 = ssub.s32 %s10, 2
      %s23 = sadd.s32 1, %s18
      %p24 = scmp.ge.s32.totalorder %s23, 1
      %s25 = scalar_select %p24, 0, %s23
      %s26 = sadd.s32 1, %s17
      %s27 = scalar_select %p24, %s26, %s17
      %p28 = scmp.ge.s32.totalorder %s27, 2
      %s29 = scalar_select %p28, 0, %s27
      %s30 = ssub.s32 %s17, %s29
      %s31 = ssub.s32 %s18, %s25
      %s32 = sor.u32 %s30, %s31
      %p33 = scmp.eq.s32.totalorder %s32, 0
      %s35 = sadd.s32 %s34, 1
      %s36 = scalar_select %p33, %s34, %s35
      %p39 = pneg %p33
      %p40 = scmp.eq.s32.totalorder %s10, 1
      %p41 = por %p39, %p40
      %p42 = scmp.ne.s32.totalorder %s34, %s37
      %p43 = scmp.eq.s32.totalorder %s10, 0
      %p44 = por %p42, %p43
      %p45 = scmp.ne.s32.totalorder %s34, %s37
      %p46 = scmp.eq.s32.totalorder %s15, 1
      %p47 = por %p45, %p46
      %p48 = scmp.ne.s32.totalorder %s37, %s38
      %p49 = scmp.eq.s32.totalorder %s15, 0
      %p50 = por %p48, %p49
      %p51 = scmp.ne.s32.totalorder %s37, %s38
      %p52 = scmp.eq.s32.totalorder %s16, 1
      %p53 = por %p51, %p52
      %p55 = scmp.ne.s32.totalorder %s38, %s54
      %p56 = scmp.eq.s32.totalorder %s16, 0
      %p57 = por %p55, %p56
      %s58 = ssub.s32 %s17, %s29
      %s59 = ssub.s32 %s18, %s25
      %s60 = sor.u32 %s58, %s59
      %p61 = scmp.eq.s32.totalorder %s60, 0
      %s63 = sadd.s32 %s62, 1
      %s64 = scalar_select %p61, %s62, %s63
      %p67 = pneg %p61
      %p68 = scmp.eq.s32.totalorder %s10, 1
      %p69 = por %p67, %p68
      %p70 = scmp.ne.s32.totalorder %s62, %s65
      %p71 = scmp.eq.s32.totalorder %s10, 0
      %p72 = por %p70, %p71
      %p73 = scmp.ne.s32.totalorder %s62, %s65
      %p74 = scmp.eq.s32.totalorder %s15, 1
      %p75 = por %p73, %p74
      %p76 = scmp.ne.s32.totalorder %s65, %s66
      %p77 = scmp.eq.s32.totalorder %s15, 0
      %p78 = por %p76, %p77
      %p79 = scmp.ne.s32.totalorder %s65, %s66
      %p80 = scmp.eq.s32.totalorder %s16, 1
      %p81 = por %p79, %p80
      %p83 = scmp.ne.s32.totalorder %s66, %s82
      %p84 = scmp.eq.s32.totalorder %s16, 0
      %p85 = por %p83, %p84
      %s87 = sadd.s32 %s86, 1
      %p90 = scmp.eq.s32.totalorder %s10, 1
      %p91 = scmp.ne.s32.totalorder %s86, %s88
      %p92 = scmp.eq.s32.totalorder %s10, 0
      %p93 = por %p91, %p92
      %p94 = scmp.ne.s32.totalorder %s86, %s88
      %p95 = scmp.eq.s32.totalorder %s15, 1
      %p96 = por %p94, %p95
      %p97 = scmp.ne.s32.totalorder %s88, %s89
      %p98 = scmp.eq.s32.totalorder %s15, 0
      %p99 = por %p97, %p98
      %p100 = scmp.ne.s32.totalorder %s88, %s89
      %p101 = scmp.eq.s32.totalorder %s16, 1
      %p102 = por %p100, %p101
      %p104 = scmp.ne.s32.totalorder %s89, %s103
      %p105 = scmp.eq.s32.totalorder %s16, 0
      %p106 = por %p104, %p105
      %s107 = ssub.s32 %s17, %s29
      %s108 = ssub.s32 %s18, %s25
      %s109 = sor.u32 %s107, %s108
      %p110 = scmp.eq.s32.totalorder %s109, 0
      %s112 = sadd.s32 %s111, 1
      %s113 = scalar_select %p110, %s111, %s112
      %p116 = pneg %p110
      %p117 = scmp.eq.s32.totalorder %s10, 1
      %p118 = por %p116, %p117
      %p119 = scmp.ne.s32.totalorder %s111, %s114
      %p120 = scmp.eq.s32.totalorder %s10, 0
      %p121 = por %p119, %p120
      %p122 = scmp.ne.s32.totalorder %s111, %s114
      %p123 = scmp.eq.s32.totalorder %s15, 1
      %p124 = por %p122, %p123
      %p125 = scmp.ne.s32.totalorder %s114, %s115
      %p126 = scmp.eq.s32.totalorder %s15, 0
      %p127 = por %p125, %p126
      %p128 = scmp.ne.s32.totalorder %s114, %s115
      %p129 = scmp.eq.s32.totalorder %s16, 1
      %p130 = por %p128, %p129
      %p132 = scmp.ne.s32.totalorder %s115, %s131
      %p133 = scmp.eq.s32.totalorder %s16, 0
      %p134 = por %p132, %p133
      %p135 = scmp.le.s32.totalorder 1, %s10
      %p136 = scmp.lt.s32.totalorder %s10, 3
      %p137 = pnand %p135, %p136
      %p138 = pneg %p137
      // Predicated region
      $region9: #{attention_block.5} parent=5 // pred_check
        _
      $region10: #{attention_block.5} parent=5 // pred_check_branch
        %140 = sbr.rel (%p137) target = $region12
      $region11: #{attention_block.5} parent=5 // pred_region
        %s141 = ssub.s32 %s10, 1
        // Predicated region
        $region13: #{attention_block.5} parent=11 // pred_check
          %p142 = pneg %p99
        $region14: #{attention_block.5} parent=11 // pred_check_branch
          %144 = sbr.rel (%p142) target = $region16
        $region15: #{attention_block.5} parent=11 // pred_region
          %s146 = ssub.s32 16, 16
          %147 = vsyncadd [#allocation3], %s146
          %s149 = sshll.u32 %s2, 4
          %s150 = int_to_ptr.vmem [resolvable:$true] %s149
          %152 = dma.vmem_to_smem %s150, 16, [#allocation2], [#allocation3]
        $region16: #{attention_block.5} parent=11 // pred_fallthru
          _
      $region12: #{attention_block.5} parent=5 // pred_fallthru
        _
      %p153 = scmp.lt.s32.totalorder %s10, 2
      // Predicated region
      $region17: #{attention_block.5} parent=5 // pred_check
        %p154 = pneg %p153
      $region18: #{attention_block.5} parent=5 // pred_check_branch
        %156 = sbr.rel (%p154) target = $region20
      $region19: #{attention_block.5} parent=5 // pred_region
        // Predicated region
        $region21: #{attention_block.5} parent=19 // pred_check
          %p157 = pneg %p44
        $region22: #{attention_block.5} parent=19 // pred_check_branch
          %159 = sbr.rel (%p157) target = $region24
        $region23: #{attention_block.5} parent=19 // pred_region
          %s160 = smul.u32 2, %s18
          %p161 = scmp.lt.s32.totalorder %s17, 1
          %s162 = scalar_select %p161, %s17, 1
          %p163 = scmp.lt.s32.totalorder %s160, 1
          %s164 = scalar_select %p163, %s160, 1
          %s165 = smul.addr %s162, 2
          %s166 = sadd.s32 %s164, %s165
          %s167 = smul.addr %s166, 8
          %s168 = scalar_lea.vmem %s0, %s167
          %s169 = smul.u32 2, %s18
        $region24: #{attention_block.5} parent=19 // pred_fallthru
          _
        // Predicated region
        $region25: #{attention_block.5} parent=19 // pred_check
          %p170 = pneg %p72
        $region26: #{attention_block.5} parent=19 // pred_check_branch
          %172 = sbr.rel (%p170) target = $region28
        $region27: #{attention_block.5} parent=19 // pred_region
          %s173 = smul.u32 2, %s18
          %p174 = scmp.lt.s32.totalorder %s17, 1
          %s175 = scalar_select %p174, %s17, 1
          %p176 = scmp.lt.s32.totalorder %s173, 1
          %s177 = scalar_select %p176, %s173, 1
          %s178 = smul.addr %s175, 2
          %s179 = sadd.s32 %s177, %s178
          %s180 = scalar_lea.vmem %s1, %s179
          %s181 = smul.u32 2, %s18
        $region28: #{attention_block.5} parent=19 // pred_fallthru
          _
      $region20: #{attention_block.5} parent=5 // pred_fallthru
        _
      %p182 = scmp.le.s32.totalorder 1, %s10
      %p183 = scmp.lt.s32.totalorder %s10, 3
      %p184 = pnand %p182, %p183
      %p185 = pneg %p184
      // Predicated region
      $region29: #{attention_block.5} parent=5 // pred_check
        _
      $region30: #{attention_block.5} parent=5 // pred_check_branch
        %187 = sbr.rel (%p184) target = $region32
      $region31: #{attention_block.5} parent=5 // pred_region
        %s188 = ssub.s32 %s10, 1
        // Predicated region
        $region33: #{attention_block.5} parent=31 // pred_check
          %p189 = pneg %p99
        $region34: #{attention_block.5} parent=31 // pred_check_branch
          %191 = sbr.rel (%p189) target = $region36
        $region35: #{attention_block.5} parent=31 // pred_region
          %192 = dma.done [#allocation3], 16
        $region36: #{attention_block.5} parent=31 // pred_fallthru
          _
        %193 = sfence
        %s194 = smul.u32 2, %s20
        %p195 = scmp.lt.s32.totalorder %s19, 1
        %s196 = scalar_select %p195, %s19, 1
        %p197 = scmp.lt.s32.totalorder %s194, 1
        %s198 = scalar_select %p197, %s194, 1
        %s199 = smul.addr %s196, 2
        %s200 = sadd.s32 %s198, %s199
        %s201 = smul.addr %s200, 8
        %s202 = scalar_lea.vmem %s0, %s201
        %p203 = pneg %p50
        %p204 = pneg %p47
        %s205 = smul.u32 2, %s20
        %p206 = scmp.lt.s32.totalorder %s19, 1
        %s207 = scalar_select %p206, %s19, 1
        %p208 = scmp.lt.s32.totalorder %s205, 1
        %s209 = scalar_select %p208, %s205, 1
        %s210 = smul.addr %s207, 2
        %s211 = sadd.s32 %s209, %s210
        %s212 = scalar_lea.vmem %s1, %s211
        %p213 = pneg %p78
        %p214 = pneg %p75
        %p215 = pneg %p99
        %p216 = pneg %p96
        %p217 = pneg %p127
        %p218 = pneg %p124
        %s219 = smul.u32 2, %s20
        %p220 = scmp.lt.s32.totalorder %s19, 1
        %s221 = scalar_select %p220, %s19, 1
        %p222 = scmp.lt.s32.totalorder %s219, 1
        %s223 = scalar_select %p222, %s219, 1
        %s224 = smul.addr %s221, 2
        %s225 = sadd.s32 %s223, %s224
        %s226 = smul.addr %s225, 8
        %s227 = scalar_lea.vmem %s3, %s226
        %s228 = smul.u32 2, %s20
        %p229 = scmp.lt.s32.totalorder %s19, 1
        %s230 = scalar_select %p229, %s19, 1
        %p231 = scmp.lt.s32.totalorder %s228, 1
        %s232 = scalar_select %p231, %s228, 1
        %s233 = smul.addr %s230, 2
        %s234 = sadd.s32 %s232, %s233
        %s235 = smul.addr %s234, 8
        %s236 = scalar_lea.vmem %s0, %s235
        %s237 = smul.u32 2, %s20
        %s238 = smul.u32 2, %s20
        %p239 = scmp.lt.s32.totalorder %s19, 1
        %s240 = scalar_select %p239, %s19, 1
        %p241 = scmp.lt.s32.totalorder %s238, 1
        %s242 = scalar_select %p241, %s238, 1
        %s243 = smul.addr %s240, 2
        %s244 = sadd.s32 %s242, %s243
        %s245 = scalar_lea.vmem %s1, %s244
        %s246 = smul.u32 2, %s20
        %s247 = smul.u32 2, %s20
        %p248 = scmp.lt.s32.totalorder %s19, 1
        %s249 = scalar_select %p248, %s19, 1
        %p250 = scmp.lt.s32.totalorder %s247, 1
        %s251 = scalar_select %p250, %s247, 1
        %s252 = smul.addr %s249, 2
        %s253 = sadd.s32 %s251, %s252
        %s254 = smul.addr %s253, 8
        %s255 = scalar_lea.vmem %s3, %s254
        %s256 = smul.u32 2, %s20
        %s257 = sld [smem:[#allocation2]]
        %s258 = sld [smem:[#allocation2 + $0x1]]
        %v259 = vld [vmem:[%s245] sm:$0x3]
        %v260 = vstv %s257
        %v261 = vmul.f32 %v259, %v260
        %v262 = vstv %s258
        %v263 = vadd.f32 %v261, %v262
        %v264 = vxor.u32 %v263, 2147483648
        %v265 = vmul.f32 %v264, 1.442695
        %v266 = vpow.pop %v265
        %v267 = vadd.f32 %v266, 1.0
        %v268 = vrcp.pop %v267
        %v269 = vmul.f32 1.0, %v268
        %v270 = vld [vmem:[%s236] sm:$0xff]
        %v271 = vld [vmem:[%s236 + $0x8] sm:$0xff]
        %v273 = vlaneseq
        %v274 = vshrl.u32 %v273, 7
        %v275 = vsub.s32 0, %v274
        %v276 = vrot.slane %v269, %v275
        %v277 = vlaneseq
        %v278 = vshrl.u32 %v277, 7
        %v279 = vsub.s32 1, %v278
        %v280 = vrot.slane %v269, %v279
        %v283 = vmul.f32 %v270, %v276
        %v284 = vmul.f32 %v271, %v280
        %285 = vst [vmem:[%s255] sm:$0xff] %v283
        %286 = vst [vmem:[%s255 + $0x8] sm:$0xff] %v284
        %s287 = smul.u32 2, %s20
        %p288 = scmp.lt.s32.totalorder %s19, 1
        %s289 = scalar_select %p288, %s19, 1
        %p290 = scmp.lt.s32.totalorder %s287, 1
        %s291 = scalar_select %p290, %s287, 1
        %s292 = smul.addr %s289, 2
        %s293 = sadd.s32 %s291, %s292
        %s294 = smul.addr %s293, 8
        %s295 = scalar_lea.vmem %s3, %s294
        // Predicated region
        $region37: #{attention_block.5} parent=31 // pred_check
          %p296 = pneg %p124
        $region38: #{attention_block.5} parent=31 // pred_check_branch
          %298 = sbr.rel (%p296) target = $region40
        $region39: #{attention_block.5} parent=31 // pred_region
          %s299 = smul.u32 2, %s20
        $region40: #{attention_block.5} parent=31 // pred_fallthru
          _
      $region32: #{attention_block.5} parent=5 // pred_fallthru
        _
      %p300 = scmp.le.s32.totalorder 2, %s10
      // Predicated region
      $region41: #{attention_block.5} parent=5 // pred_check
        %p301 = pneg %p300
      $region42: #{attention_block.5} parent=5 // pred_check_branch
        %303 = sbr.rel (%p301) target = $region44
      $region43: #{attention_block.5} parent=5 // pred_region
        %s304 = ssub.s32 %s10, 2
        // Predicated region
        $region45: #{attention_block.5} parent=43 // pred_check
          %p305 = pneg %p130
        $region46: #{attention_block.5} parent=43 // pred_check_branch
          %307 = sbr.rel (%p305) target = $region48
        $region47: #{attention_block.5} parent=43 // pred_region
          %s308 = smul.u32 2, %s22
          %p309 = scmp.lt.s32.totalorder %s21, 1
          %s310 = scalar_select %p309, %s21, 1
          %p311 = scmp.lt.s32.totalorder %s308, 1
          %s312 = scalar_select %p311, %s308, 1
          %s313 = smul.addr %s310, 2
          %s314 = sadd.s32 %s312, %s313
          %s315 = smul.addr %s314, 8
          %s316 = scalar_lea.vmem %s3, %s315
        $region48: #{attention_block.5} parent=43 // pred_fallthru
          _
      $region44: #{attention_block.5} parent=5 // pred_fallthru
        _
    $region6: #{attention_block.5} parent=1 // loop_footer
      %s14 = sadd.s32 1, %s10
    $region7: #{attention_block.5} parent=1 // loop_footer_branch
      %9 = sbr.rel target = $region3
    $region8: #{attention_block.5} parent=1 // loop_exit
      _
    %317 = vsyncpa [#allocation3], 1
    %s318 = scalar_lea.sflag [#allocation3], 1
    %319 = vsyncpa %s318, 1

// kernel: attention_block.4
$region0: #{attention_block.4}
  #allocation0 [shape = 'u32[]', space=smem, size = 0x4, offset = 0x4, fixed_abs, tag = 'smem constant byte address 0x4 - core index']
  #allocation1 [shape = 'u32[144,128]{1,0:T(1,128)}', space=vmem, size = 0x12000, scoped, tag = 'internal scratch']
  %s0 = inlined_call_operand.vmem [shape: bf16[2,4,256], index: 0, kind: input, shape index: {}]
  %s1 = inlined_call_operand.vmem [shape: bf16[2,4,256], index: 1, kind: input, shape index: {}]
  %s2 = inlined_call_operand.vmem [shape: f32[4,1], index: 2, kind: input, shape index: {}]
  %s3 = inlined_call_operand.vmem [shape: f32[4,1], index: 3, kind: input, shape index: {}]
  %s4 = inlined_call_operand.vmem [shape: f32[4,1], index: 4, kind: input, shape index: {}]
  %s5 = inlined_call_operand.vmem [shape: f32[4,1], index: 5, kind: input, shape index: {}]
  %s6 = inlined_call_operand.vmem [shape: f32[2,1,256], index: 6, kind: output, shape index: {0}]
  %s7 = inlined_call_operand.vmem [shape: f32[2,1,1,1], index: 7, kind: output, shape index: {1}]
  %s8 = inlined_call_operand.vmem [shape: f32[2,1,1,1], index: 8, kind: output, shape index: {2}]
  %9 = xla_tuple %s6, %s7, %s8
  %s10 = sld [smem:[#allocation0]]
  $region73: #{attention_block.4} parent=0
    _
  %s12 = ssub.s32 1, %s10
  %s13 = scalar_select 0, %s12, %s10
  loop: start=0, step=1, limit=4
  $region2: #{attention_block.4} parent=0 // loop_pre_header
    _
  $region3: #{attention_block.4} parent=0 // loop_header
    %s15 = sphi 0, %s19
    %p16 = scmp.ge.s32.totalorder %s15, 4
    %s22 = sphi 0, %s34
    %s23 = sphi 0, %s30
    %s24 = sphi 0, %s22
    %s25 = sphi 0, %s23
    %s26 = sphi 0, %s24
    %s27 = sphi 0, %s25
    %s39 = sphi 0, %s41
    %s42 = sphi 0, %s39
    %s43 = sphi 0, %s42
    %s59 = sphi 0, %s43
    %s67 = sphi 0, %s69
    %s70 = sphi 0, %s67
    %s71 = sphi 0, %s70
    %s87 = sphi 0, %s71
    %s91 = sphi 0, %s91
    %s93 = sphi 0, %s91
    %s94 = sphi 0, %s93
    %s108 = sphi 0, %s94
    %s112 = sphi 0, %s112
    %s114 = sphi 0, %s112
    %s115 = sphi 0, %s114
    %s129 = sphi 0, %s115
    %s133 = sphi 0, %s133
    %s135 = sphi 0, %s133
    %s136 = sphi 0, %s135
    %s150 = sphi 0, %s136
    %s154 = sphi 0, %s154
    %s156 = sphi 0, %s154
    %s157 = sphi 0, %s156
    %s171 = sphi 0, %s157
    %s179 = sphi 0, %s181
    %s182 = sphi 0, %s179
    %s183 = sphi 0, %s182
    %s199 = sphi 0, %s183
    %s207 = sphi 0, %s209
    %s210 = sphi 0, %s207
    %s211 = sphi 0, %s210
    %s227 = sphi 0, %s211
    %s235 = sphi 0, %s237
    %s238 = sphi 0, %s235
    %s239 = sphi 0, %s238
    %s255 = sphi 0, %s239
  $region4: #{attention_block.4} parent=0 // loop_header_branch
    %18 = sbr.rel (%p16) target = $region8
  $region5: #{attention_block.4} parent=0 // loop_body
    %s20 = ssub.s32 %s15, 1
    %s21 = ssub.s32 %s15, 2
    %s28 = sadd.s32 1, %s23
    %p29 = scmp.ge.s32.totalorder %s28, 1
    %s30 = scalar_select %p29, 0, %s28
    %s31 = sadd.s32 1, %s22
    %s32 = scalar_select %p29, %s31, %s22
    %p33 = scmp.ge.s32.totalorder %s32, 2
    %s34 = scalar_select %p33, 0, %s32
    %s35 = ssub.s32 %s22, %s34
    %s36 = ssub.s32 %s23, %s30
    %s37 = sor.u32 %s35, %s36
    %p38 = scmp.eq.s32.totalorder %s37, 0
    %s40 = sadd.s32 %s39, 1
    %s41 = scalar_select %p38, %s39, %s40
    %p44 = pneg %p38
    %p45 = scmp.eq.s32.totalorder %s15, 1
    %p46 = por %p44, %p45
    %p47 = scmp.ne.s32.totalorder %s39, %s42
    %p48 = scmp.eq.s32.totalorder %s15, 0
    %p49 = por %p47, %p48
    %p50 = scmp.ne.s32.totalorder %s39, %s42
    %p51 = scmp.eq.s32.totalorder %s20, 1
    %p52 = por %p50, %p51
    %p53 = scmp.ne.s32.totalorder %s42, %s43
    %p54 = scmp.eq.s32.totalorder %s20, 0
    %p55 = por %p53, %p54
    %p56 = scmp.ne.s32.totalorder %s42, %s43
    %p57 = scmp.eq.s32.totalorder %s21, 1
    %p58 = por %p56, %p57
    %p60 = scmp.ne.s32.totalorder %s43, %s59
    %p61 = scmp.eq.s32.totalorder %s21, 0
    %p62 = por %p60, %p61
    %s63 = ssub.s32 %s22, %s34
    %s64 = ssub.s32 %s23, %s30
    %s65 = sor.u32 %s63, %s64
    %p66 = scmp.eq.s32.totalorder %s65, 0
    %s68 = sadd.s32 %s67, 1
    %s69 = scalar_select %p66, %s67, %s68
    %p72 = pneg %p66
    %p73 = scmp.eq.s32.totalorder %s15, 1
    %p74 = por %p72, %p73
    %p75 = scmp.ne.s32.totalorder %s67, %s70
    %p76 = scmp.eq.s32.totalorder %s15, 0
    %p77 = por %p75, %p76
    %p78 = scmp.ne.s32.totalorder %s67, %s70
    %p79 = scmp.eq.s32.totalorder %s20, 1
    %p80 = por %p78, %p79
    %p81 = scmp.ne.s32.totalorder %s70, %s71
    %p82 = scmp.eq.s32.totalorder %s20, 0
    %p83 = por %p81, %p82
    %p84 = scmp.ne.s32.totalorder %s70, %s71
    %p85 = scmp.eq.s32.totalorder %s21, 1
    %p86 = por %p84, %p85
    %p88 = scmp.ne.s32.totalorder %s71, %s87
    %p89 = scmp.eq.s32.totalorder %s21, 0
    %p90 = por %p88, %p89
    %s92 = sadd.s32 %s91, 1
    %p95 = scmp.eq.s32.totalorder %s15, 1
    %p96 = scmp.ne.s32.totalorder %s91, %s93
    %p97 = scmp.eq.s32.totalorder %s15, 0
    %p98 = por %p96, %p97
    %p99 = scmp.ne.s32.totalorder %s91, %s93
    %p100 = scmp.eq.s32.totalorder %s20, 1
    %p101 = por %p99, %p100
    %p102 = scmp.ne.s32.totalorder %s93, %s94
    %p103 = scmp.eq.s32.totalorder %s20, 0
    %p104 = por %p102, %p103
    %p105 = scmp.ne.s32.totalorder %s93, %s94
    %p106 = scmp.eq.s32.totalorder %s21, 1
    %p107 = por %p105, %p106
    %p109 = scmp.ne.s32.totalorder %s94, %s108
    %p110 = scmp.eq.s32.totalorder %s21, 0
    %p111 = por %p109, %p110
    %s113 = sadd.s32 %s112, 1
    %p116 = scmp.eq.s32.totalorder %s15, 1
    %p117 = scmp.ne.s32.totalorder %s112, %s114
    %p118 = scmp.eq.s32.totalorder %s15, 0
    %p119 = por %p117, %p118
    %p120 = scmp.ne.s32.totalorder %s112, %s114
    %p121 = scmp.eq.s32.totalorder %s20, 1
    %p122 = por %p120, %p121
    %p123 = scmp.ne.s32.totalorder %s114, %s115
    %p124 = scmp.eq.s32.totalorder %s20, 0
    %p125 = por %p123, %p124
    %p126 = scmp.ne.s32.totalorder %s114, %s115
    %p127 = scmp.eq.s32.totalorder %s21, 1
    %p128 = por %p126, %p127
    %p130 = scmp.ne.s32.totalorder %s115, %s129
    %p131 = scmp.eq.s32.totalorder %s21, 0
    %p132 = por %p130, %p131
    %s134 = sadd.s32 %s133, 1
    %p137 = scmp.eq.s32.totalorder %s15, 1
    %p138 = scmp.ne.s32.totalorder %s133, %s135
    %p139 = scmp.eq.s32.totalorder %s15, 0
    %p140 = por %p138, %p139
    %p141 = scmp.ne.s32.totalorder %s133, %s135
    %p142 = scmp.eq.s32.totalorder %s20, 1
    %p143 = por %p141, %p142
    %p144 = scmp.ne.s32.totalorder %s135, %s136
    %p145 = scmp.eq.s32.totalorder %s20, 0
    %p146 = por %p144, %p145
    %p147 = scmp.ne.s32.totalorder %s135, %s136
    %p148 = scmp.eq.s32.totalorder %s21, 1
    %p149 = por %p147, %p148
    %p151 = scmp.ne.s32.totalorder %s136, %s150
    %p152 = scmp.eq.s32.totalorder %s21, 0
    %p153 = por %p151, %p152
    %s155 = sadd.s32 %s154, 1
    %p158 = scmp.eq.s32.totalorder %s15, 1
    %p159 = scmp.ne.s32.totalorder %s154, %s156
    %p160 = scmp.eq.s32.totalorder %s15, 0
    %p161 = por %p159, %p160
    %p162 = scmp.ne.s32.totalorder %s154, %s156
    %p163 = scmp.eq.s32.totalorder %s20, 1
    %p164 = por %p162, %p163
    %p165 = scmp.ne.s32.totalorder %s156, %s157
    %p166 = scmp.eq.s32.totalorder %s20, 0
    %p167 = por %p165, %p166
    %p168 = scmp.ne.s32.totalorder %s156, %s157
    %p169 = scmp.eq.s32.totalorder %s21, 1
    %p170 = por %p168, %p169
    %p172 = scmp.ne.s32.totalorder %s157, %s171
    %p173 = scmp.eq.s32.totalorder %s21, 0
    %p174 = por %p172, %p173
    %s175 = ssub.s32 %s22, %s34
    %s176 = ssub.s32 %s23, %s30
    %s177 = sor.u32 %s175, %s176
    %p178 = scmp.eq.s32.totalorder %s177, 0
    %s180 = sadd.s32 %s179, 1
    %s181 = scalar_select %p178, %s179, %s180
    %p184 = pneg %p178
    %p185 = scmp.eq.s32.totalorder %s15, 1
    %p186 = por %p184, %p185
    %p187 = scmp.ne.s32.totalorder %s179, %s182
    %p188 = scmp.eq.s32.totalorder %s15, 0
    %p189 = por %p187, %p188
    %p190 = scmp.ne.s32.totalorder %s179, %s182
    %p191 = scmp.eq.s32.totalorder %s20, 1
    %p192 = por %p190, %p191
    %p193 = scmp.ne.s32.totalorder %s182, %s183
    %p194 = scmp.eq.s32.totalorder %s20, 0
    %p195 = por %p193, %p194
    %p196 = scmp.ne.s32.totalorder %s182, %s183
    %p197 = scmp.eq.s32.totalorder %s21, 1
    %p198 = por %p196, %p197
    %p200 = scmp.ne.s32.totalorder %s183, %s199
    %p201 = scmp.eq.s32.totalorder %s21, 0
    %p202 = por %p200, %p201
    %s203 = ssub.s32 %s22, %s34
    %s204 = ssub.s32 %s23, %s30
    %s205 = sor.u32 %s203, %s204
    %p206 = scmp.eq.s32.totalorder %s205, 0
    %s208 = sadd.s32 %s207, 1
    %s209 = scalar_select %p206, %s207, %s208
    %p212 = pneg %p206
    %p213 = scmp.eq.s32.totalorder %s15, 1
    %p214 = por %p212, %p213
    %p215 = scmp.ne.s32.totalorder %s207, %s210
    %p216 = scmp.eq.s32.totalorder %s15, 0
    %p217 = por %p215, %p216
    %p218 = scmp.ne.s32.totalorder %s207, %s210
    %p219 = scmp.eq.s32.totalorder %s20, 1
    %p220 = por %p218, %p219
    %p221 = scmp.ne.s32.totalorder %s210, %s211
    %p222 = scmp.eq.s32.totalorder %s20, 0
    %p223 = por %p221, %p222
    %p224 = scmp.ne.s32.totalorder %s210, %s211
    %p225 = scmp.eq.s32.totalorder %s21, 1
    %p226 = por %p224, %p225
    %p228 = scmp.ne.s32.totalorder %s211, %s227
    %p229 = scmp.eq.s32.totalorder %s21, 0
    %p230 = por %p228, %p229
    %s231 = ssub.s32 %s22, %s34
    %s232 = ssub.s32 %s23, %s30
    %s233 = sor.u32 %s231, %s232
    %p234 = scmp.eq.s32.totalorder %s233, 0
    %s236 = sadd.s32 %s235, 1
    %s237 = scalar_select %p234, %s235, %s236
    %p240 = pneg %p234
    %p241 = scmp.eq.s32.totalorder %s15, 1
    %p242 = por %p240, %p241
    %p243 = scmp.ne.s32.totalorder %s235, %s238
    %p244 = scmp.eq.s32.totalorder %s15, 0
    %p245 = por %p243, %p244
    %p246 = scmp.ne.s32.totalorder %s235, %s238
    %p247 = scmp.eq.s32.totalorder %s20, 1
    %p248 = por %p246, %p247
    %p249 = scmp.ne.s32.totalorder %s238, %s239
    %p250 = scmp.eq.s32.totalorder %s20, 0
    %p251 = por %p249, %p250
    %p252 = scmp.ne.s32.totalorder %s238, %s239
    %p253 = scmp.eq.s32.totalorder %s21, 1
    %p254 = por %p252, %p253
    %p256 = scmp.ne.s32.totalorder %s239, %s255
    %p257 = scmp.eq.s32.totalorder %s21, 0
    %p258 = por %p256, %p257
    %p259 = scmp.le.s32.totalorder 1, %s15
    %p260 = scmp.lt.s32.totalorder %s15, 3
    %p261 = pnand %p259, %p260
    %p262 = pneg %p261
    // Predicated region
    $region9: #{attention_block.4} parent=5 // pred_check
      _
    $region10: #{attention_block.4} parent=5 // pred_check_branch
      %264 = sbr.rel (%p261) target = $region12
    $region11: #{attention_block.4} parent=5 // pred_region
      %s265 = ssub.s32 %s15, 1
      // Predicated region
      $region13: #{attention_block.4} parent=11 // pred_check
        %p266 = pneg %p104
      $region14: #{attention_block.4} parent=11 // pred_check_branch
        %268 = sbr.rel (%p266) target = $region16
      $region15: #{attention_block.4} parent=11 // pred_region
        _
      $region16: #{attention_block.4} parent=11 // pred_fallthru
        _
      // Predicated region
      $region17: #{attention_block.4} parent=11 // pred_check
        %p269 = pneg %p125
      $region18: #{attention_block.4} parent=11 // pred_check_branch
        %271 = sbr.rel (%p269) target = $region20
      $region19: #{attention_block.4} parent=11 // pred_region
        _
      $region20: #{attention_block.4} parent=11 // pred_fallthru
        _
      // Predicated region
      $region21: #{attention_block.4} parent=11 // pred_check
        %p272 = pneg %p146
      $region22: #{attention_block.4} parent=11 // pred_check_branch
        %274 = sbr.rel (%p272) target = $region24
      $region23: #{attention_block.4} parent=11 // pred_region
        _
      $region24: #{attention_block.4} parent=11 // pred_fallthru
        _
      // Predicated region
      $region25: #{attention_block.4} parent=11 // pred_check
        %p275 = pneg %p167
      $region26: #{attention_block.4} parent=11 // pred_check_branch
        %277 = sbr.rel (%p275) target = $region28
      $region27: #{attention_block.4} parent=11 // pred_region
        _
      $region28: #{attention_block.4} parent=11 // pred_fallthru
        _
    $region12: #{attention_block.4} parent=5 // pred_fallthru
      _
    %p278 = scmp.lt.s32.totalorder %s15, 2
    // Predicated region
    $region29: #{attention_block.4} parent=5 // pred_check
      %p279 = pneg %p278
    $region30: #{attention_block.4} parent=5 // pred_check_branch
      %281 = sbr.rel (%p279) target = $region32
    $region31: #{attention_block.4} parent=5 // pred_region
      // Predicated region
      $region33: #{attention_block.4} parent=31 // pred_check
        %p282 = pneg %p49
      $region34: #{attention_block.4} parent=31 // pred_check_branch
        %284 = sbr.rel (%p282) target = $region36
      $region35: #{attention_block.4} parent=31 // pred_region
        %s285 = smul.u32 2, %s23
        %p286 = scmp.lt.s32.totalorder %s22, 1
        %s287 = scalar_select %p286, %s22, 1
        %p288 = scmp.lt.s32.totalorder %s285, 1
        %s289 = scalar_select %p288, %s285, 1
        %s290 = smul.addr %s287, 2
        %s291 = sadd.s32 %s289, %s290
        %s292 = smul.addr %s291, 2
        %s293 = scalar_lea.vmem %s0, %s292
        %s294 = smul.u32 2, %s23
      $region36: #{attention_block.4} parent=31 // pred_fallthru
        _
      // Predicated region
      $region37: #{attention_block.4} parent=31 // pred_check
        %p295 = pneg %p77
      $region38: #{attention_block.4} parent=31 // pred_check_branch
        %297 = sbr.rel (%p295) target = $region40
      $region39: #{attention_block.4} parent=31 // pred_region
        %s298 = smul.u32 2, %s23
        %p299 = scmp.lt.s32.totalorder %s22, 1
        %s300 = scalar_select %p299, %s22, 1
        %p301 = scmp.lt.s32.totalorder %s298, 1
        %s302 = scalar_select %p301, %s298, 1
        %s303 = smul.addr %s300, 2
        %s304 = sadd.s32 %s302, %s303
        %s305 = smul.addr %s304, 2
        %s306 = scalar_lea.vmem %s1, %s305
        %s307 = smul.u32 2, %s23
      $region40: #{attention_block.4} parent=31 // pred_fallthru
        _
    $region32: #{attention_block.4} parent=5 // pred_fallthru
      _
    %p308 = scmp.le.s32.totalorder 1, %s15
    %p309 = scmp.lt.s32.totalorder %s15, 3
    %p310 = pnand %p308, %p309
    %p311 = pneg %p310
    // Predicated region
    $region41: #{attention_block.4} parent=5 // pred_check
      _
    $region42: #{attention_block.4} parent=5 // pred_check_branch
      %313 = sbr.rel (%p310) target = $region44
    $region43: #{attention_block.4} parent=5 // pred_region
      %s314 = ssub.s32 %s15, 1
      %s315 = smul.u32 2, %s25
      %p316 = scmp.lt.s32.totalorder %s24, 1
      %s317 = scalar_select %p316, %s24, 1
      %p318 = scmp.lt.s32.totalorder %s315, 1
      %s319 = scalar_select %p318, %s315, 1
      %s320 = smul.addr %s317, 2
      %s321 = sadd.s32 %s319, %s320
      %s322 = smul.addr %s321, 2
      %s323 = scalar_lea.vmem %s0, %s322
      %p324 = pneg %p55
      %p325 = pneg %p52
      %s326 = smul.u32 2, %s25
      %p327 = scmp.lt.s32.totalorder %s24, 1
      %s328 = scalar_select %p327, %s24, 1
      %p329 = scmp.lt.s32.totalorder %s326, 1
      %s330 = scalar_select %p329, %s326, 1
      %s331 = smul.addr %s328, 2
      %s332 = sadd.s32 %s330, %s331
      %s333 = smul.addr %s332, 2
      %s334 = scalar_lea.vmem %s1, %s333
      %p335 = pneg %p83
      %p336 = pneg %p80
      %p337 = pneg %p104
      %p338 = pneg %p101
      %p339 = pneg %p125
      %p340 = pneg %p122
      %p341 = pneg %p146
      %p342 = pneg %p143
      %p343 = pneg %p167
      %p344 = pneg %p164
      %p345 = pneg %p195
      %p346 = pneg %p192
      %s347 = smul.u32 2, %s25
      %p348 = scmp.lt.s32.totalorder %s24, 1
      %s349 = scalar_select %p348, %s24, 1
      %p350 = scmp.lt.s32.totalorder %s347, 1
      %s351 = scalar_select %p350, %s347, 1
      %s352 = smul.addr %s349, 2
      %s353 = sadd.s32 %s351, %s352
      %s354 = scalar_lea.vmem %s6, %s353
      %p355 = pneg %p223
      %p356 = pneg %p220
      %p357 = scmp.lt.s32.totalorder %s24, 1
      %s358 = scalar_select %p357, %s24, 1
      %p359 = scmp.lt.s32.totalorder %s25, 0
      %s360 = scalar_select %p359, %s25, 0
      %s361 = sadd.s32 %s360, %s358
      %s362 = scalar_lea.vmem %s7, %s361
      %p363 = pneg %p251
      %p364 = pneg %p248
      %p365 = scmp.lt.s32.totalorder %s24, 1
      %s366 = scalar_select %p365, %s24, 1
      %p367 = scmp.lt.s32.totalorder %s25, 0
      %s368 = scalar_select %p367, %s25, 0
      %s369 = sadd.s32 %s368, %s366
      %s370 = scalar_lea.vmem %s8, %s369
      %s371 = smul.u32 2, %s25
      %p372 = scmp.lt.s32.totalorder %s24, 1
      %s373 = scalar_select %p372, %s24, 1
      %p374 = scmp.lt.s32.totalorder %s371, 1
      %s375 = scalar_select %p374, %s371, 1
      %s376 = smul.addr %s373, 2
      %s377 = sadd.s32 %s375, %s376
      %s378 = smul.addr %s377, 2
      %s379 = scalar_lea.vmem %s0, %s378
      %s380 = smul.u32 2, %s25
      %s381 = smul.u32 2, %s25
      %p382 = scmp.lt.s32.totalorder %s24, 1
      %s383 = scalar_select %p382, %s24, 1
      %p384 = scmp.lt.s32.totalorder %s381, 1
      %s385 = scalar_select %p384, %s381, 1
      %s386 = smul.addr %s383, 2
      %s387 = sadd.s32 %s385, %s386
      %s388 = smul.addr %s387, 2
      %s389 = scalar_lea.vmem %s1, %s388
      %s390 = smul.u32 2, %s25
      %s391 = smul.u32 2, %s25
      %p392 = scmp.lt.s32.totalorder %s24, 1
      %s393 = scalar_select %p392, %s24, 1
      %p394 = scmp.lt.s32.totalorder %s391, 1
      %s395 = scalar_select %p394, %s391, 1
      %s396 = smul.addr %s393, 2
      %s397 = sadd.s32 %s395, %s396
      %s398 = scalar_lea.vmem %s6, %s397
      %s399 = smul.u32 2, %s25
      %p400 = scmp.lt.s32.totalorder %s24, 1
      %s401 = scalar_select %p400, %s24, 1
      %p402 = scmp.lt.s32.totalorder %s25, 0
      %s403 = scalar_select %p402, %s25, 0
      %s404 = sadd.s32 %s403, %s401
      %s405 = scalar_lea.vmem %s7, %s404
      %p406 = scmp.lt.s32.totalorder %s24, 1
      %s407 = scalar_select %p406, %s24, 1
      %p408 = scmp.lt.s32.totalorder %s25, 0
      %s409 = scalar_select %p408, %s25, 0
      %s410 = sadd.s32 %s409, %s407
      %s411 = scalar_lea.vmem %s8, %s410
      %v412 = vld [vmem:[%s379] sm:$0xf]
      %v413 = vunpack.c.l.bf16 %v412
      %v414 = vld [vmem:[%s389] sm:$0xf]
      %v415 = vunpack.c.l.bf16 %v414
      %v416 = vld [vmem:[%s2] sm:$0xf]
      %418 = vset.pattern.permute.xlu0 0
      %419 = vperm.xlu0 %418, %v416
      %v420 = vpop.permute.xlu0 %419
      %v422 = vunpack.c.l.s4 839922192
      %v423 = vunpack.c.0.s8 %v422
      %v424 = vlaneseq
      %v425 = vshrl.u32 %v424, 7
      %v426 = vsub.s32 %v423, %v425
      %v427 = vrot.slane %v420, %v426
      %v429 = vmul.f32 %v413, %v427
      %v430 = vld [vmem:[%s3] sm:$0xf]
      %432 = vset.pattern.permute.xlu0 0
      %433 = vperm.xlu0 %432, %v430
      %v434 = vpop.permute.xlu0 %433
      %v436 = vunpack.c.l.s4 839922192
      %v437 = vunpack.c.0.s8 %v436
      %v438 = vlaneseq
      %v439 = vshrl.u32 %v438, 7
      %v440 = vsub.s32 %v437, %v439
      %v441 = vrot.slane %v434, %v440
      %v443 = vmul.f32 %v415, %v441
      %v444 = vadd.f32 %v429, %v443
      %v445 = vld [vmem:[%s4] sm:$0xf]
      %447 = vset.pattern.permute.xlu0 0
      %448 = vperm.xlu0 %447, %v445
      %v449 = vpop.permute.xlu0 %448
      %v451 = vunpack.c.l.s4 839922192
      %v452 = vunpack.c.0.s8 %v451
      %v453 = vlaneseq
      %v454 = vshrl.u32 %v453, 7
      %v455 = vsub.s32 %v452, %v454
      %v456 = vrot.slane %v449, %v455
      %v458 = vadd.f32 %v444, %v456
      %v459 = vmax.f32 %v458, 0.0
      %v460 = vld [vmem:[%s5] sm:$0xf]
      %462 = vset.pattern.permute.xlu0 0
      %463 = vperm.xlu0 %462, %v460
      %v464 = vpop.permute.xlu0 %463
      %v466 = vunpack.c.l.s4 839922192
      %v467 = vunpack.c.0.s8 %v466
      %v468 = vlaneseq
      %v469 = vshrl.u32 %v468, 7
      %v470 = vsub.s32 %v467, %v469
      %v471 = vrot.slane %v464, %v470
      %v473 = vmul.f32 %v459, %v471
      %v475 = vcombine.high %v473, %v473
      %vm477 = vcmask 1043456
      %v478 = vsel %vm477, %v473, 0.0
      %v479 = vrot.slane %v478, 4
      %v480 = vadd.f32 %v478, %v479
      %v481 = vrot.slane %v480, 2
      %v482 = vadd.f32 %v480, %v481
      %v483 = vrot.slane %v482, 1
      %v484 = vadd.f32 %v482, %v483
      %v485 = vsel %vm477, %v475, 0.0
      %v486 = vrot.slane %v485, 4
      %v487 = vadd.f32 %v485, %v486
      %v488 = vrot.slane %v487, 2
      %v489 = vadd.f32 %v487, %v488
      %v490 = vrot.slane %v489, 1
      %v491 = vadd.f32 %v489, %v490
      %v494 = vcombine.low %v484, %v491
      %v496 = vunpack.c.l.s4 1966171168
      %v497 = vunpack.c.0.s8 %v496
      %v498 = vlaneseq
      %v499 = vshrl.u32 %v498, 7
      %v500 = vsub.s32 %v497, %v499
      %v501 = vrot.slane %v494, %v500
      %v503 = vunpack.c.l.s4 1966171168
      %v504 = vunpack.c.0.s8 %v503
      %v505 = vlaneseq
      %v506 = vshrl.u32 %v505, 7
      %v507 = vsub.s32 %v504, %v506
      %v508 = vrot.slane %v501, %v507
      %v510 = vlaneseq
      %vm511 = vcmp.ge.s32.totalorder %v510, 0
      %vm512 = vcmp.lt.s32.totalorder %v510, 256
      %vm513 = vmand %vm511, %vm512
      %514 = vst.msk [vmem:[%s398] sm:$0x3] %vm513, %v508
      %v515 = vadd.f32 %v484, %v491
      %516 = vadd.xlane.f32.xlu0 %v515
      %v517 = vpop.xlane.xlu0 %516
      %vm518 = vcmask 0
      %519 = vst.msk [vmem:[%s405] sm:$0x1] %vm518, %v517
      %v520 = vmul.f32 %v484, %v484
      %v521 = vmul.f32 %v491, %v491
      %v522 = vadd.f32 %v520, %v521
      %523 = vadd.xlane.f32.xlu0 %v522
      %v524 = vpop.xlane.xlu0 %523
      %525 = vst.msk [vmem:[%s411] sm:$0x1] %vm518, %v524
      %s526 = smul.u32 2, %s25
      %p527 = scmp.lt.s32.totalorder %s24, 1
      %s528 = scalar_select %p527, %s24, 1
      %p529 = scmp.lt.s32.totalorder %s526, 1
      %s530 = scalar_select %p529, %s526, 1
      %s531 = smul.addr %s528, 2
      %s532 = sadd.s32 %s530, %s531
      %s533 = scalar_lea.vmem %s6, %s532
      %p534 = scmp.lt.s32.totalorder %s24, 1
      %s535 = scalar_select %p534, %s24, 1
      %p536 = scmp.lt.s32.totalorder %s25, 0
      %s537 = scalar_select %p536, %s25, 0
      %s538 = sadd.s32 %s537, %s535
      %s539 = scalar_lea.vmem %s7, %s538
      %p540 = scmp.lt.s32.totalorder %s24, 1
      %s541 = scalar_select %p540, %s24, 1
      %p542 = scmp.lt.s32.totalorder %s25, 0
      %s543 = scalar_select %p542, %s25, 0
      %s544 = sadd.s32 %s543, %s541
      %s545 = scalar_lea.vmem %s8, %s544
      // Predicated region
      $region45: #{attention_block.4} parent=43 // pred_check
        %p546 = pneg %p192
      $region46: #{attention_block.4} parent=43 // pred_check_branch
        %548 = sbr.rel (%p546) target = $region48
      $region47: #{attention_block.4} parent=43 // pred_region
        %s549 = smul.u32 2, %s25
      $region48: #{attention_block.4} parent=43 // pred_fallthru
        _
      // Predicated region
      $region49: #{attention_block.4} parent=43 // pred_check
        %p550 = pneg %p220
      $region50: #{attention_block.4} parent=43 // pred_check_branch
        %552 = sbr.rel (%p550) target = $region52
      $region51: #{attention_block.4} parent=43 // pred_region
        _
      $region52: #{attention_block.4} parent=43 // pred_fallthru
        _
      // Predicated region
      $region53: #{attention_block.4} parent=43 // pred_check
        %p553 = pneg %p248
      $region54: #{attention_block.4} parent=43 // pred_check_branch
        %555 = sbr.rel (%p553) target = $region56
      $region55: #{attention_block.4} parent=43 // pred_region
        _
      $region56: #{attention_block.4} parent=43 // pred_fallthru
        _
    $region44: #{attention_block.4} parent=5 // pred_fallthru
      _
    %p556 = scmp.le.s32.totalorder 2, %s15
    // Predicated region
    $region57: #{attention_block.4} parent=5 // pred_check
      %p557 = pneg %p556
    $region58: #{attention_block.4} parent=5 // pred_check_branch
      %559 = sbr.rel (%p557) target = $region60
    $region59: #{attention_block.4} parent=5 // pred_region
      %s560 = ssub.s32 %s15, 2
      // Predicated region
      $region61: #{attention_block.4} parent=59 // pred_check
        %p561 = pneg %p198
      $region62: #{attention_block.4} parent=59 // pred_check_branch
        %563 = sbr.rel (%p561) target = $region64
      $region63: #{attention_block.4} parent=59 // pred_region
        %s564 = smul.u32 2, %s27
        %p565 = scmp.lt.s32.totalorder %s26, 1
        %s566 = scalar_select %p565, %s26, 1
        %p567 = scmp.lt.s32.totalorder %s564, 1
        %s568 = scalar_select %p567, %s564, 1
        %s569 = smul.addr %s566, 2
        %s570 = sadd.s32 %s568, %s569
        %s571 = scalar_lea.vmem %s6, %s570
      $region64: #{attention_block.4} parent=59 // pred_fallthru
        _
      // Predicated region
      $region65: #{attention_block.4} parent=59 // pred_check
        %p572 = pneg %p226
      $region66: #{attention_block.4} parent=59 // pred_check_branch
        %574 = sbr.rel (%p572) target = $region68
      $region67: #{attention_block.4} parent=59 // pred_region
        %p575 = scmp.lt.s32.totalorder %s26, 1
        %s576 = scalar_select %p575, %s26, 1
        %p577 = scmp.lt.s32.totalorder %s27, 0
        %s578 = scalar_select %p577, %s27, 0
        %s579 = sadd.s32 %s578, %s576
        %s580 = scalar_lea.vmem %s7, %s579
      $region68: #{attention_block.4} parent=59 // pred_fallthru
        _
      // Predicated region
      $region69: #{attention_block.4} parent=59 // pred_check
        %p581 = pneg %p254
      $region70: #{attention_block.4} parent=59 // pred_check_branch
        %583 = sbr.rel (%p581) target = $region72
      $region71: #{attention_block.4} parent=59 // pred_region
        %p584 = scmp.lt.s32.totalorder %s26, 1
        %s585 = scalar_select %p584, %s26, 1
        %p586 = scmp.lt.s32.totalorder %s27, 0
        %s587 = scalar_select %p586, %s27, 0
        %s588 = sadd.s32 %s587, %s585
        %s589 = scalar_lea.vmem %s8, %s588
      $region72: #{attention_block.4} parent=59 // pred_fallthru
        _
    $region60: #{attention_block.4} parent=5 // pred_fallthru
      _
  $region6: #{attention_block.4} parent=0 // loop_footer
    %s19 = sadd.s32 1, %s15
  $region7: #{attention_block.4} parent=0 // loop_footer_branch
    %14 = sbr.rel target = $region3
  $region8: #{attention_block.4} parent=0 // loop_exit
    _

// kernel: attention_block.3
$region0: #{attention_block.3}
  #allocation0 [shape = 'u32[]', space=smem, size = 0x4, offset = 0x4, fixed_abs, tag = 'smem constant byte address 0x4 - core index']
  #allocation1 [shape = 'u32[144,128]{1,0:T(1,128)}', space=vmem, size = 0x12000, scoped, tag = 'internal scratch']
  %s0 = inlined_call_operand.vmem [shape: f32[2,8,256], index: 0, kind: input, shape index: {}]
  %s1 = inlined_call_operand.vmem [shape: f32[2,8,256], index: 1, kind: input, shape index: {}]
  %s2 = inlined_call_operand.vmem [shape: bf16[4,8], index: 2, kind: input, shape index: {}]
  %s3 = inlined_call_operand.vmem [shape: bf16[4,8], index: 3, kind: input, shape index: {}]
  %s4 = inlined_call_operand.vmem [shape: bf16[2,4,256], index: 4, kind: output, shape index: {0}]
  %s5 = inlined_call_operand.vmem [shape: bf16[2,4,256], index: 5, kind: output, shape index: {1}]
  %s6 = inlined_call_operand.vmem [shape: f32[2,1,4,1], index: 6, kind: output, shape index: {2}]
  %s7 = inlined_call_operand.vmem [shape: f32[2,1,4,1], index: 7, kind: output, shape index: {3}]
  %s8 = inlined_call_operand.vmem [shape: f32[2,1,4,1], index: 8, kind: output, shape index: {4}]
  %s9 = inlined_call_operand.vmem [shape: f32[2,1,4,1], index: 9, kind: output, shape index: {5}]
  %10 = xla_tuple %s4, %s5, %s6, %s7, %s8, %s9
  %s11 = sld [smem:[#allocation0]]
  $region89: #{attention_block.3} parent=0
    _
  %s13 = ssub.s32 1, %s11
  %s14 = scalar_select 0, %s13, %s11
  loop: start=0, step=1, limit=4
  $region2: #{attention_block.3} parent=0 // loop_pre_header
    _
  $region3: #{attention_block.3} parent=0 // loop_header
    %s16 = sphi 0, %s20
    %p17 = scmp.ge.s32.totalorder %s16, 4
    %s23 = sphi 0, %s35
    %s24 = sphi 0, %s31
    %s25 = sphi 0, %s23
    %s26 = sphi 0, %s24
    %s27 = sphi 0, %s25
    %s28 = sphi 0, %s26
    %s40 = sphi 0, %s42
    %s43 = sphi 0, %s40
    %s44 = sphi 0, %s43
    %s60 = sphi 0, %s44
    %s68 = sphi 0, %s70
    %s71 = sphi 0, %s68
    %s72 = sphi 0, %s71
    %s88 = sphi 0, %s72
    %s92 = sphi 0, %s92
    %s94 = sphi 0, %s92
    %s95 = sphi 0, %s94
    %s109 = sphi 0, %s95
    %s113 = sphi 0, %s113
    %s115 = sphi 0, %s113
    %s116 = sphi 0, %s115
    %s130 = sphi 0, %s116
    %s138 = sphi 0, %s140
    %s141 = sphi 0, %s138
    %s142 = sphi 0, %s141
    %s158 = sphi 0, %s142
    %s166 = sphi 0, %s168
    %s169 = sphi 0, %s166
    %s170 = sphi 0, %s169
    %s186 = sphi 0, %s170
    %s194 = sphi 0, %s196
    %s197 = sphi 0, %s194
    %s198 = sphi 0, %s197
    %s214 = sphi 0, %s198
    %s222 = sphi 0, %s224
    %s225 = sphi 0, %s222
    %s226 = sphi 0, %s225
    %s242 = sphi 0, %s226
    %s250 = sphi 0, %s252
    %s253 = sphi 0, %s250
    %s254 = sphi 0, %s253
    %s270 = sphi 0, %s254
    %s278 = sphi 0, %s280
    %s281 = sphi 0, %s278
    %s282 = sphi 0, %s281
    %s298 = sphi 0, %s282
  $region4: #{attention_block.3} parent=0 // loop_header_branch
    %19 = sbr.rel (%p17) target = $region8
  $region5: #{attention_block.3} parent=0 // loop_body
    %s21 = ssub.s32 %s16, 1
    %s22 = ssub.s32 %s16, 2
    %s29 = sadd.s32 1, %s24
    %p30 = scmp.ge.s32.totalorder %s29, 1
    %s31 = scalar_select %p30, 0, %s29
    %s32 = sadd.s32 1, %s23
    %s33 = scalar_select %p30, %s32, %s23
    %p34 = scmp.ge.s32.totalorder %s33, 2
    %s35 = scalar_select %p34, 0, %s33
    %s36 = ssub.s32 %s23, %s35
    %s37 = ssub.s32 %s24, %s31
    %s38 = sor.u32 %s36, %s37
    %p39 = scmp.eq.s32.totalorder %s38, 0
    %s41 = sadd.s32 %s40, 1
    %s42 = scalar_select %p39, %s40, %s41
    %p45 = pneg %p39
    %p46 = scmp.eq.s32.totalorder %s16, 1
    %p47 = por %p45, %p46
    %p48 = scmp.ne.s32.totalorder %s40, %s43
    %p49 = scmp.eq.s32.totalorder %s16, 0
    %p50 = por %p48, %p49
    %p51 = scmp.ne.s32.totalorder %s40, %s43
    %p52 = scmp.eq.s32.totalorder %s21, 1
    %p53 = por %p51, %p52
    %p54 = scmp.ne.s32.totalorder %s43, %s44
    %p55 = scmp.eq.s32.totalorder %s21, 0
    %p56 = por %p54, %p55
    %p57 = scmp.ne.s32.totalorder %s43, %s44
    %p58 = scmp.eq.s32.totalorder %s22, 1
    %p59 = por %p57, %p58
    %p61 = scmp.ne.s32.totalorder %s44, %s60
    %p62 = scmp.eq.s32.totalorder %s22, 0
    %p63 = por %p61, %p62
    %s64 = ssub.s32 %s23, %s35
    %s65 = ssub.s32 %s24, %s31
    %s66 = sor.u32 %s64, %s65
    %p67 = scmp.eq.s32.totalorder %s66, 0
    %s69 = sadd.s32 %s68, 1
    %s70 = scalar_select %p67, %s68, %s69
    %p73 = pneg %p67
    %p74 = scmp.eq.s32.totalorder %s16, 1
    %p75 = por %p73, %p74
    %p76 = scmp.ne.s32.totalorder %s68, %s71
    %p77 = scmp.eq.s32.totalorder %s16, 0
    %p78 = por %p76, %p77
    %p79 = scmp.ne.s32.totalorder %s68, %s71
    %p80 = scmp.eq.s32.totalorder %s21, 1
    %p81 = por %p79, %p80
    %p82 = scmp.ne.s32.totalorder %s71, %s72
    %p83 = scmp.eq.s32.totalorder %s21, 0
    %p84 = por %p82, %p83
    %p85 = scmp.ne.s32.totalorder %s71, %s72
    %p86 = scmp.eq.s32.totalorder %s22, 1
    %p87 = por %p85, %p86
    %p89 = scmp.ne.s32.totalorder %s72, %s88
    %p90 = scmp.eq.s32.totalorder %s22, 0
    %p91 = por %p89, %p90
    %s93 = sadd.s32 %s92, 1
    %p96 = scmp.eq.s32.totalorder %s16, 1
    %p97 = scmp.ne.s32.totalorder %s92, %s94
    %p98 = scmp.eq.s32.totalorder %s16, 0
    %p99 = por %p97, %p98
    %p100 = scmp.ne.s32.totalorder %s92, %s94
    %p101 = scmp.eq.s32.totalorder %s21, 1
    %p102 = por %p100, %p101
    %p103 = scmp.ne.s32.totalorder %s94, %s95
    %p104 = scmp.eq.s32.totalorder %s21, 0
    %p105 = por %p103, %p104
    %p106 = scmp.ne.s32.totalorder %s94, %s95
    %p107 = scmp.eq.s32.totalorder %s22, 1
    %p108 = por %p106, %p107
    %p110 = scmp.ne.s32.totalorder %s95, %s109
    %p111 = scmp.eq.s32.totalorder %s22, 0
    %p112 = por %p110, %p111
    %s114 = sadd.s32 %s113, 1
    %p117 = scmp.eq.s32.totalorder %s16, 1
    %p118 = scmp.ne.s32.totalorder %s113, %s115
    %p119 = scmp.eq.s32.totalorder %s16, 0
    %p120 = por %p118, %p119
    %p121 = scmp.ne.s32.totalorder %s113, %s115
    %p122 = scmp.eq.s32.totalorder %s21, 1
    %p123 = por %p121, %p122
    %p124 = scmp.ne.s32.totalorder %s115, %s116
    %p125 = scmp.eq.s32.totalorder %s21, 0
    %p126 = por %p124, %p125
    %p127 = scmp.ne.s32.totalorder %s115, %s116
    %p128 = scmp.eq.s32.totalorder %s22, 1
    %p129 = por %p127, %p128
    %p131 = scmp.ne.s32.totalorder %s116, %s130
    %p132 = scmp.eq.s32.totalorder %s22, 0
    %p133 = por %p131, %p132
    %s134 = ssub.s32 %s23, %s35
    %s135 = ssub.s32 %s24, %s31
    %s136 = sor.u32 %s134, %s135
    %p137 = scmp.eq.s32.totalorder %s136, 0
    %s139 = sadd.s32 %s138, 1
    %s140 = scalar_select %p137, %s138, %s139
    %p143 = pneg %p137
    %p144 = scmp.eq.s32.totalorder %s16, 1
    %p145 = por %p143, %p144
    %p146 = scmp.ne.s32.totalorder %s138, %s141
    %p147 = scmp.eq.s32.totalorder %s16, 0
    %p148 = por %p146, %p147
    %p149 = scmp.ne.s32.totalorder %s138, %s141
    %p150 = scmp.eq.s32.totalorder %s21, 1
    %p151 = por %p149, %p150
    %p152 = scmp.ne.s32.totalorder %s141, %s142
    %p153 = scmp.eq.s32.totalorder %s21, 0
    %p154 = por %p152, %p153
    %p155 = scmp.ne.s32.totalorder %s141, %s142
    %p156 = scmp.eq.s32.totalorder %s22, 1
    %p157 = por %p155, %p156
    %p159 = scmp.ne.s32.totalorder %s142, %s158
    %p160 = scmp.eq.s32.totalorder %s22, 0
    %p161 = por %p159, %p160
    %s162 = ssub.s32 %s23, %s35
    %s163 = ssub.s32 %s24, %s31
    %s164 = sor.u32 %s162, %s163
    %p165 = scmp.eq.s32.totalorder %s164, 0
    %s167 = sadd.s32 %s166, 1
    %s168 = scalar_select %p165, %s166, %s167
    %p171 = pneg %p165
    %p172 = scmp.eq.s32.totalorder %s16, 1
    %p173 = por %p171, %p172
    %p174 = scmp.ne.s32.totalorder %s166, %s169
    %p175 = scmp.eq.s32.totalorder %s16, 0
    %p176 = por %p174, %p175
    %p177 = scmp.ne.s32.totalorder %s166, %s169
    %p178 = scmp.eq.s32.totalorder %s21, 1
    %p179 = por %p177, %p178
    %p180 = scmp.ne.s32.totalorder %s169, %s170
    %p181 = scmp.eq.s32.totalorder %s21, 0
    %p182 = por %p180, %p181
    %p183 = scmp.ne.s32.totalorder %s169, %s170
    %p184 = scmp.eq.s32.totalorder %s22, 1
    %p185 = por %p183, %p184
    %p187 = scmp.ne.s32.totalorder %s170, %s186
    %p188 = scmp.eq.s32.totalorder %s22, 0
    %p189 = por %p187, %p188
    %s190 = ssub.s32 %s23, %s35
    %s191 = ssub.s32 %s24, %s31
    %s192 = sor.u32 %s190, %s191
    %p193 = scmp.eq.s32.totalorder %s192, 0
    %s195 = sadd.s32 %s194, 1
    %s196 = scalar_select %p193, %s194, %s195
    %p199 = pneg %p193
    %p200 = scmp.eq.s32.totalorder %s16, 1
    %p201 = por %p199, %p200
    %p202 = scmp.ne.s32.totalorder %s194, %s197
    %p203 = scmp.eq.s32.totalorder %s16, 0
    %p204 = por %p202, %p203
    %p205 = scmp.ne.s32.totalorder %s194, %s197
    %p206 = scmp.eq.s32.totalorder %s21, 1
    %p207 = por %p205, %p206
    %p208 = scmp.ne.s32.totalorder %s197, %s198
    %p209 = scmp.eq.s32.totalorder %s21, 0
    %p210 = por %p208, %p209
    %p211 = scmp.ne.s32.totalorder %s197, %s198
    %p212 = scmp.eq.s32.totalorder %s22, 1
    %p213 = por %p211, %p212
    %p215 = scmp.ne.s32.totalorder %s198, %s214
    %p216 = scmp.eq.s32.totalorder %s22, 0
    %p217 = por %p215, %p216
    %s218 = ssub.s32 %s23, %s35
    %s219 = ssub.s32 %s24, %s31
    %s220 = sor.u32 %s218, %s219
    %p221 = scmp.eq.s32.totalorder %s220, 0
    %s223 = sadd.s32 %s222, 1
    %s224 = scalar_select %p221, %s222, %s223
    %p227 = pneg %p221
    %p228 = scmp.eq.s32.totalorder %s16, 1
    %p229 = por %p227, %p228
    %p230 = scmp.ne.s32.totalorder %s222, %s225
    %p231 = scmp.eq.s32.totalorder %s16, 0
    %p232 = por %p230, %p231
    %p233 = scmp.ne.s32.totalorder %s222, %s225
    %p234 = scmp.eq.s32.totalorder %s21, 1
    %p235 = por %p233, %p234
    %p236 = scmp.ne.s32.totalorder %s225, %s226
    %p237 = scmp.eq.s32.totalorder %s21, 0
    %p238 = por %p236, %p237
    %p239 = scmp.ne.s32.totalorder %s225, %s226
    %p240 = scmp.eq.s32.totalorder %s22, 1
    %p241 = por %p239, %p240
    %p243 = scmp.ne.s32.totalorder %s226, %s242
    %p244 = scmp.eq.s32.totalorder %s22, 0
    %p245 = por %p243, %p244
    %s246 = ssub.s32 %s23, %s35
    %s247 = ssub.s32 %s24, %s31
    %s248 = sor.u32 %s246, %s247
    %p249 = scmp.eq.s32.totalorder %s248, 0
    %s251 = sadd.s32 %s250, 1
    %s252 = scalar_select %p249, %s250, %s251
    %p255 = pneg %p249
    %p256 = scmp.eq.s32.totalorder %s16, 1
    %p257 = por %p255, %p256
    %p258 = scmp.ne.s32.totalorder %s250, %s253
    %p259 = scmp.eq.s32.totalorder %s16, 0
    %p260 = por %p258, %p259
    %p261 = scmp.ne.s32.totalorder %s250, %s253
    %p262 = scmp.eq.s32.totalorder %s21, 1
    %p263 = por %p261, %p262
    %p264 = scmp.ne.s32.totalorder %s253, %s254
    %p265 = scmp.eq.s32.totalorder %s21, 0
    %p266 = por %p264, %p265
    %p267 = scmp.ne.s32.totalorder %s253, %s254
    %p268 = scmp.eq.s32.totalorder %s22, 1
    %p269 = por %p267, %p268
    %p271 = scmp.ne.s32.totalorder %s254, %s270
    %p272 = scmp.eq.s32.totalorder %s22, 0
    %p273 = por %p271, %p272
    %s274 = ssub.s32 %s23, %s35
    %s275 = ssub.s32 %s24, %s31
    %s276 = sor.u32 %s274, %s275
    %p277 = scmp.eq.s32.totalorder %s276, 0
    %s279 = sadd.s32 %s278, 1
    %s280 = scalar_select %p277, %s278, %s279
    %p283 = pneg %p277
    %p284 = scmp.eq.s32.totalorder %s16, 1
    %p285 = por %p283, %p284
    %p286 = scmp.ne.s32.totalorder %s278, %s281
    %p287 = scmp.eq.s32.totalorder %s16, 0
    %p288 = por %p286, %p287
    %p289 = scmp.ne.s32.totalorder %s278, %s281
    %p290 = scmp.eq.s32.totalorder %s21, 1
    %p291 = por %p289, %p290
    %p292 = scmp.ne.s32.totalorder %s281, %s282
    %p293 = scmp.eq.s32.totalorder %s21, 0
    %p294 = por %p292, %p293
    %p295 = scmp.ne.s32.totalorder %s281, %s282
    %p296 = scmp.eq.s32.totalorder %s22, 1
    %p297 = por %p295, %p296
    %p299 = scmp.ne.s32.totalorder %s282, %s298
    %p300 = scmp.eq.s32.totalorder %s22, 0
    %p301 = por %p299, %p300
    %p302 = scmp.le.s32.totalorder 1, %s16
    %p303 = scmp.lt.s32.totalorder %s16, 3
    %p304 = pnand %p302, %p303
    %p305 = pneg %p304
    // Predicated region
    $region9: #{attention_block.3} parent=5 // pred_check
      _
    $region10: #{attention_block.3} parent=5 // pred_check_branch
      %307 = sbr.rel (%p304) target = $region12
    $region11: #{attention_block.3} parent=5 // pred_region
      %s308 = ssub.s32 %s16, 1
      // Predicated region
      $region13: #{attention_block.3} parent=11 // pred_check
        %p309 = pneg %p105
      $region14: #{attention_block.3} parent=11 // pred_check_branch
        %311 = sbr.rel (%p309) target = $region16
      $region15: #{attention_block.3} parent=11 // pred_region
        _
      $region16: #{attention_block.3} parent=11 // pred_fallthru
        _
      // Predicated region
      $region17: #{attention_block.3} parent=11 // pred_check
        %p312 = pneg %p126
      $region18: #{attention_block.3} parent=11 // pred_check_branch
        %314 = sbr.rel (%p312) target = $region20
      $region19: #{attention_block.3} parent=11 // pred_region
        _
      $region20: #{attention_block.3} parent=11 // pred_fallthru
        _
    $region12: #{attention_block.3} parent=5 // pred_fallthru
      _
    %p315 = scmp.lt.s32.totalorder %s16, 2
    // Predicated region
    $region21: #{attention_block.3} parent=5 // pred_check
      %p316 = pneg %p315
    $region22: #{attention_block.3} parent=5 // pred_check_branch
      %318 = sbr.rel (%p316) target = $region24
    $region23: #{attention_block.3} parent=5 // pred_region
      // Predicated region
      $region25: #{attention_block.3} parent=23 // pred_check
        %p319 = pneg %p50
      $region26: #{attention_block.3} parent=23 // pred_check_branch
        %321 = sbr.rel (%p319) target = $region28
      $region27: #{attention_block.3} parent=23 // pred_region
        %s322 = smul.u32 2, %s24
        %p323 = scmp.lt.s32.totalorder %s23, 1
        %s324 = scalar_select %p323, %s23, 1
        %p325 = scmp.lt.s32.totalorder %s322, 1
        %s326 = scalar_select %p325, %s322, 1
        %s327 = smul.addr %s324, 2
        %s328 = sadd.s32 %s326, %s327
        %s329 = smul.addr %s328, 8
        %s330 = scalar_lea.vmem %s0, %s329
        %s331 = smul.u32 2, %s24
      $region28: #{attention_block.3} parent=23 // pred_fallthru
        _
      // Predicated region
      $region29: #{attention_block.3} parent=23 // pred_check
        %p332 = pneg %p78
      $region30: #{attention_block.3} parent=23 // pred_check_branch
        %334 = sbr.rel (%p332) target = $region32
      $region31: #{attention_block.3} parent=23 // pred_region
        %s335 = smul.u32 2, %s24
        %p336 = scmp.lt.s32.totalorder %s23, 1
        %s337 = scalar_select %p336, %s23, 1
        %p338 = scmp.lt.s32.totalorder %s335, 1
        %s339 = scalar_select %p338, %s335, 1
        %s340 = smul.addr %s337, 2
        %s341 = sadd.s32 %s339, %s340
        %s342 = smul.addr %s341, 8
        %s343 = scalar_lea.vmem %s1, %s342
        %s344 = smul.u32 2, %s24
      $region32: #{attention_block.3} parent=23 // pred_fallthru
        _
    $region24: #{attention_block.3} parent=5 // pred_fallthru
      _
    %p345 = scmp.le.s32.totalorder 1, %s16
    %p346 = scmp.lt.s32.totalorder %s16, 3
    %p347 = pnand %p345, %p346
    %p348 = pneg %p347
    // Predicated region
    $region33: #{attention_block.3} parent=5 // pred_check
      _
    $region34: #{attention_block.3} parent=5 // pred_check_branch
      %350 = sbr.rel (%p347) target = $region36
    $region35: #{attention_block.3} parent=5 // pred_region
      %s351 = ssub.s32 %s16, 1
      %s352 = smul.u32 2, %s26
      %p353 = scmp.lt.s32.totalorder %s25, 1
      %s354 = scalar_select %p353, %s25, 1
      %p355 = scmp.lt.s32.totalorder %s352, 1
      %s356 = scalar_select %p355, %s352, 1
      %s357 = smul.addr %s354, 2
      %s358 = sadd.s32 %s356, %s357
      %s359 = smul.addr %s358, 8
      %s360 = scalar_lea.vmem %s0, %s359
      %p361 = pneg %p56
      %p362 = pneg %p53
      %s363 = smul.u32 2, %s26
      %p364 = scmp.lt.s32.totalorder %s25, 1
      %s365 = scalar_select %p364, %s25, 1
      %p366 = scmp.lt.s32.totalorder %s363, 1
      %s367 = scalar_select %p366, %s363, 1
      %s368 = smul.addr %s365, 2
      %s369 = sadd.s32 %s367, %s368
      %s370 = smul.addr %s369, 8
      %s371 = scalar_lea.vmem %s1, %s370
      %p372 = pneg %p84
      %p373 = pneg %p81
      %p374 = pneg %p105
      %p375 = pneg %p102
      %p376 = pneg %p126
      %p377 = pneg %p123
      %p378 = pneg %p154
      %p379 = pneg %p151
      %s380 = smul.u32 2, %s26
      %p381 = scmp.lt.s32.totalorder %s25, 1
      %s382 = scalar_select %p381, %s25, 1
      %p383 = scmp.lt.s32.totalorder %s380, 1
      %s384 = scalar_select %p383, %s380, 1
      %s385 = smul.addr %s382, 2
      %s386 = sadd.s32 %s384, %s385
      %s387 = smul.addr %s386, 2
      %s388 = scalar_lea.vmem %s4, %s387
      %p389 = pneg %p182
      %p390 = pneg %p179
      %s391 = smul.u32 2, %s26
      %p392 = scmp.lt.s32.totalorder %s25, 1
      %s393 = scalar_select %p392, %s25, 1
      %p394 = scmp.lt.s32.totalorder %s391, 1
      %s395 = scalar_select %p394, %s391, 1
      %s396 = smul.addr %s393, 2
      %s397 = sadd.s32 %s395, %s396
      %s398 = smul.addr %s397, 2
      %s399 = scalar_lea.vmem %s5, %s398
      %p400 = pneg %p210
      %p401 = pneg %p207
      %p402 = scmp.lt.s32.totalorder %s25, 1
      %s403 = scalar_select %p402, %s25, 1
      %p404 = scmp.lt.s32.totalorder %s26, 0
      %s405 = scalar_select %p404, %s26, 0
      %s406 = sadd.s32 %s405, %s403
      %s407 = smul.addr %s406, 4
      %s408 = scalar_lea.vmem %s6, %s407
      %p409 = pneg %p238
      %p410 = pneg %p235
      %p411 = scmp.lt.s32.totalorder %s25, 1
      %s412 = scalar_select %p411, %s25, 1
      %p413 = scmp.lt.s32.totalorder %s26, 0
      %s414 = scalar_select %p413, %s26, 0
      %s415 = sadd.s32 %s414, %s412
      %s416 = smul.addr %s415, 4
      %s417 = scalar_lea.vmem %s7, %s416
      %p418 = pneg %p266
      %p419 = pneg %p263
      %p420 = scmp.lt.s32.totalorder %s25, 1
      %s421 = scalar_select %p420, %s25, 1
      %p422 = scmp.lt.s32.totalorder %s26, 0
      %s423 = scalar_select %p422, %s26, 0
      %s424 = sadd.s32 %s423, %s421
      %s425 = smul.addr %s424, 4
      %s426 = scalar_lea.vmem %s8, %s425
      %p427 = pneg %p294
      %p428 = pneg %p291
      %p429 = scmp.lt.s32.totalorder %s25, 1
      %s430 = scalar_select %p429, %s25, 1
      %p431 = scmp.lt.s32.totalorder %s26, 0
      %s432 = scalar_select %p431, %s26, 0
      %s433 = sadd.s32 %s432, %s430
      %s434 = smul.addr %s433, 4
      %s435 = scalar_lea.vmem %s9, %s434
      %s436 = smul.u32 2, %s26
      %p437 = scmp.lt.s32.totalorder %s25, 1
      %s438 = scalar_select %p437, %s25, 1
      %p439 = scmp.lt.s32.totalorder %s436, 1
      %s440 = scalar_select %p439, %s436, 1
      %s441 = smul.addr %s438, 2
      %s442 = sadd.s32 %s440, %s441
      %s443 = smul.addr %s442, 8
      %s444 = scalar_lea.vmem %s0, %s443
      %s445 = smul.u32 2, %s26
      %s446 = smul.u32 2, %s26
      %p447 = scmp.lt.s32.totalorder %s25, 1
      %s448 = scalar_select %p447, %s25, 1
      %p449 = scmp.lt.s32.totalorder %s446, 1
      %s450 = scalar_select %p449, %s446, 1
      %s451 = smul.addr %s448, 2
      %s452 = sadd.s32 %s450, %s451
      %s453 = smul.addr %s452, 8
      %s454 = scalar_lea.vmem %s1, %s453
      %s455 = smul.u32 2, %s26
      %s456 = smul.u32 2, %s26
      %p457 = scmp.lt.s32.totalorder %s25, 1
      %s458 = scalar_select %p457, %s25, 1
      %p459 = scmp.lt.s32.totalorder %s456, 1
      %s460 = scalar_select %p459, %s456, 1
      %s461 = smul.addr %s458, 2
      %s462 = sadd.s32 %s460, %s461
      %s463 = smul.addr %s462, 2
      %s464 = scalar_lea.vmem %s4, %s463
      %s465 = smul.u32 2, %s26
      %s466 = smul.u32 2, %s26
      %p467 = scmp.lt.s32.totalorder %s25, 1
      %s468 = scalar_select %p467, %s25, 1
      %p469 = scmp.lt.s32.totalorder %s466, 1
      %s470 = scalar_select %p469, %s466, 1
      %s471 = smul.addr %s468, 2
      %s472 = sadd.s32 %s470, %s471
      %s473 = smul.addr %s472, 2
      %s474 = scalar_lea.vmem %s5, %s473
      %s475 = smul.u32 2, %s26
      %p476 = scmp.lt.s32.totalorder %s25, 1
      %s477 = scalar_select %p476, %s25, 1
      %p478 = scmp.lt.s32.totalorder %s26, 0
      %s479 = scalar_select %p478, %s26, 0
      %s480 = sadd.s32 %s479, %s477
      %s481 = smul.addr %s480, 4
      %s482 = scalar_lea.vmem %s6, %s481
      %p483 = scmp.lt.s32.totalorder %s25, 1
      %s484 = scalar_select %p483, %s25, 1
      %p485 = scmp.lt.s32.totalorder %s26, 0
      %s486 = scalar_select %p485, %s26, 0
      %s487 = sadd.s32 %s486, %s484
      %s488 = smul.addr %s487, 4
      %s489 = scalar_lea.vmem %s7, %s488
      %p490 = scmp.lt.s32.totalorder %s25, 1
      %s491 = scalar_select %p490, %s25, 1
      %p492 = scmp.lt.s32.totalorder %s26, 0
      %s493 = scalar_select %p492, %s26, 0
      %s494 = sadd.s32 %s493, %s491
      %s495 = smul.addr %s494, 4
      %s496 = scalar_lea.vmem %s8, %s495
      %p497 = scmp.lt.s32.totalorder %s25, 1
      %s498 = scalar_select %p497, %s25, 1
      %p499 = scmp.lt.s32.totalorder %s26, 0
      %s500 = scalar_select %p499, %s26, 0
      %s501 = sadd.s32 %s500, %s498
      %s502 = smul.addr %s501, 4
      %s503 = scalar_lea.vmem %s9, %s502
      %v505 = vld [vmem:[%s2] sm:$0x3]
      %v506 = vld [vmem:[%s444] sm:$0xff]
      %v507 = vld [vmem:[%s444 + $0x8] sm:$0xff]
      %v508 = vpack.c.bf16 %v506, %v506
      %v509 = vpack.c.bf16 %v507, %v507
      %vm510 = vcmask 64512
      %v512 = vsel %vm510, %v505, 0
      %vm514 = vcmask 1043456
      %v516 = vsel %vm514, %v508, 0
      %v519 = vsel %vm514, %v509, 0
      %521 = vmatprep.subr.bf16.mxu0 %v519
      %522 = vmatpush1.bf16.msra.mxu0 %v516
      %523 = vmatprep.subr.bf16.mxu0 0
      %524 = vmatpush1.bf16.msra.mxu0 0
      %525 = vmatprep.subr.bf16.mxu0 0
      %526 = vmatpush1.bf16.msra.mxu0 0
      %527 = vmatprep.subr.bf16.mxu0 0
      %528 = vmatpush1.bf16.msra.mxu0 0
      %529 = vmatprep.subr.bf16.mxu0 0
      %530 = vmatpush1.bf16.msra.mxu0 0
      %531 = vmatprep.subr.bf16.mxu0 0
      %532 = vmatpush1.bf16.msra.mxu0 0
      %533 = vmatprep.subr.bf16.mxu0 0
      %534 = vmatpush1.bf16.msra.mxu0 0
      %535 = vmatprep.subr.bf16.mxu0 0
      %536 = vmatpush1.bf16.msra.mxu0 0
      %537 = vmatprep.subr.bf16.mxu0 0
      %538 = vmatpush1.bf16.msra.mxu0 0
      %539 = vmatprep.subr.bf16.mxu0 0
      %540 = vmatpush1.bf16.msra.mxu0 0
      %541 = vmatprep.subr.bf16.mxu0 0
      %542 = vmatpush1.bf16.msra.mxu0 0
      %543 = vmatprep.subr.bf16.mxu0 0
      %544 = vmatpush1.bf16.msra.mxu0 0
      %545 = vmatprep.subr.bf16.mxu0 0
      %546 = vmatpush1.bf16.msra.mxu0 0
      %547 = vmatprep.subr.bf16.mxu0 0
      %548 = vmatpush1.bf16.msra.mxu0 0
      %549 = vmatprep.subr.bf16.mxu0 0
      %550 = vmatpush1.bf16.msra.mxu0 0
      %551 = vmatprep.subr.bf16.mxu0 0
      %552 = vmatpush1.bf16.msra.mxu0 0
      %553 = vmatprep.mubr.bf16.mxu0 0
      %554 = vmatmul.mubr.bf16.gmra.mrb[0].mxu0 %v512
      %v555 = vpop.f32.mrb[0].mxu0
      %v556 = vadd.f32 0.0, %v555
      %v557 = vpop.f32.mrb[0].mxu0
      %v558 = vadd.f32 0.0, %v557
      %v559 = vpop.f32.mrb[0].mxu0
      %v560 = vpop.f32.mrb[0].mxu0
      %561 = vdwg.mxu0
      %v562 = vld [vmem:[%s3] sm:$0x3]
      %v563 = vld [vmem:[%s454] sm:$0xff]
      %v564 = vld [vmem:[%s454 + $0x8] sm:$0xff]
      %v565 = vpack.c.bf16 %v563, %v563
      %v566 = vpack.c.bf16 %v564, %v564
      %v568 = vsel %vm510, %v562, 0
      %v571 = vsel %vm514, %v565, 0
      %v574 = vsel %vm514, %v566, 0
      %576 = vmatprep.subr.bf16.mxu0 %v574
      %577 = vmatpush1.bf16.msra.mxu0 %v571
      %578 = vmatprep.subr.bf16.mxu0 0
      %579 = vmatpush1.bf16.msra.mxu0 0
      %580 = vmatprep.subr.bf16.mxu0 0
      %581 = vmatpush1.bf16.msra.mxu0 0
      %582 = vmatprep.subr.bf16.mxu0 0
      %583 = vmatpush1.bf16.msra.mxu0 0
      %584 = vmatprep.subr.bf16.mxu0 0
      %585 = vmatpush1.bf16.msra.mxu0 0
      %586 = vmatprep.subr.bf16.mxu0 0
      %587 = vmatpush1.bf16.msra.mxu0 0
      %588 = vmatprep.subr.bf16.mxu0 0
      %589 = vmatpush1.bf16.msra.mxu0 0
      %590 = vmatprep.subr.bf16.mxu0 0
      %591 = vmatpush1.bf16.msra.mxu0 0
      %592 = vmatprep.subr.bf16.mxu0 0
      %593 = vmatpush1.bf16.msra.mxu0 0
      %594 = vmatprep.subr.bf16.mxu0 0
      %595 = vmatpush1.bf16.msra.mxu0 0
      %596 = vmatprep.subr.bf16.mxu0 0
      %597 = vmatpush1.bf16.msra.mxu0 0
      %598 = vmatprep.subr.bf16.mxu0 0
      %599 = vmatpush1.bf16.msra.mxu0 0
      %600 = vmatprep.subr.bf16.mxu0 0
      %601 = vmatpush1.bf16.msra.mxu0 0
      %602 = vmatprep.subr.bf16.mxu0 0
      %603 = vmatpush1.bf16.msra.mxu0 0
      %604 = vmatprep.subr.bf16.mxu0 0
      %605 = vmatpush1.bf16.msra.mxu0 0
      %606 = vmatprep.subr.bf16.mxu0 0
      %607 = vmatpush1.bf16.msra.mxu0 0
      %608 = vmatprep.mubr.bf16.mxu0 0
      %609 = vmatmul.mubr.bf16.gmra.mrb[0].mxu0 %v568
      %v610 = vpop.f32.mrb[0].mxu0
      %v611 = vadd.f32 0.0, %v610
      %v612 = vpop.f32.mrb[0].mxu0
      %v613 = vadd.f32 0.0, %v612
      %v614 = vpop.f32.mrb[0].mxu0
      %v615 = vpop.f32.mrb[0].mxu0
      %616 = vdwg.mxu0
      %v617 = vpack.c.bf16 %v556, %v556
      %v618 = vpack.c.bf16 %v558, %v558
      %v621 = vcombine.low %v617, %v618
      %v623 = vunpack.c.l.s4 1983009808
      %v624 = vunpack.c.0.s8 %v623
      %v625 = vlaneseq
      %v626 = vshrl.u32 %v625, 7
      %v627 = vsub.s32 %v624, %v626
      %v628 = vrot.slane %v621, %v627
      %630 = vst [vmem:[%s464] sm:$0xf] %v628
      %v631 = vpack.c.bf16 %v611, %v611
      %v632 = vpack.c.bf16 %v613, %v613
      %v635 = vcombine.low %v631, %v632
      %v637 = vunpack.c.l.s4 1983009808
      %v638 = vunpack.c.0.s8 %v637
      %v639 = vlaneseq
      %v640 = vshrl.u32 %v639, 7
      %v641 = vsub.s32 %v638, %v640
      %v642 = vrot.slane %v635, %v641
      %644 = vst [vmem:[%s474] sm:$0xf] %v642
      %v645 = vsel %vm514, %v556, 0.0
      %v646 = vsel %vm514, %v558, 0.0
      %v647 = vadd.f32 %v645, %v646
      %648 = vadd.xlane.f32.xlu0 %v647
      %v649 = vpop.xlane.xlu0 %648
      %vm650 = vcmask 3072
      %651 = vst.msk [vmem:[%s482] sm:$0xf] %vm650, %v649
      %v652 = vmul.f32 %v556, %v556
      %v653 = vmul.f32 %v558, %v558
      %v654 = vsel %vm514, %v652, 0.0
      %v655 = vsel %vm514, %v653, 0.0
      %v656 = vadd.f32 %v654, %v655
      %657 = vadd.xlane.f32.xlu0 %v656
      %v658 = vpop.xlane.xlu0 %657
      %659 = vst.msk [vmem:[%s489] sm:$0xf] %vm650, %v658
      %v660 = vsel %vm514, %v611, 0.0
      %v661 = vsel %vm514, %v613, 0.0
      %v662 = vadd.f32 %v660, %v661
      %663 = vadd.xlane.f32.xlu0 %v662
      %v664 = vpop.xlane.xlu0 %663
      %665 = vst.msk [vmem:[%s496] sm:$0xf] %vm650, %v664
      %v666 = vmul.f32 %v611, %v611
      %v667 = vmul.f32 %v613, %v613
      %v668 = vsel %vm514, %v666, 0.0
      %v669 = vsel %vm514, %v667, 0.0
      %v670 = vadd.f32 %v668, %v669
      %671 = vadd.xlane.f32.xlu0 %v670
      %v672 = vpop.xlane.xlu0 %671
      %673 = vst.msk [vmem:[%s503] sm:$0xf] %vm650, %v672
      %s674 = smul.u32 2, %s26
      %p675 = scmp.lt.s32.totalorder %s25, 1
      %s676 = scalar_select %p675, %s25, 1
      %p677 = scmp.lt.s32.totalorder %s674, 1
      %s678 = scalar_select %p677, %s674, 1
      %s679 = smul.addr %s676, 2
      %s680 = sadd.s32 %s678, %s679
      %s681 = smul.addr %s680, 2
      %s682 = scalar_lea.vmem %s4, %s681
      %s683 = smul.u32 2, %s26
      %p684 = scmp.lt.s32.totalorder %s25, 1
      %s685 = scalar_select %p684, %s25, 1
      %p686 = scmp.lt.s32.totalorder %s683, 1
      %s687 = scalar_select %p686, %s683, 1
      %s688 = smul.addr %s685, 2
      %s689 = sadd.s32 %s687, %s688
      %s690 = smul.addr %s689, 2
      %s691 = scalar_lea.vmem %s5, %s690
      %p692 = scmp.lt.s32.totalorder %s25, 1
      %s693 = scalar_select %p692, %s25, 1
      %p694 = scmp.lt.s32.totalorder %s26, 0
      %s695 = scalar_select %p694, %s26, 0
      %s696 = sadd.s32 %s695, %s693
      %s697 = smul.addr %s696, 4
      %s698 = scalar_lea.vmem %s6, %s697
      %p699 = scmp.lt.s32.totalorder %s25, 1
      %s700 = scalar_select %p699, %s25, 1
      %p701 = scmp.lt.s32.totalorder %s26, 0
      %s702 = scalar_select %p701, %s26, 0
      %s703 = sadd.s32 %s702, %s700
      %s704 = smul.addr %s703, 4
      %s705 = scalar_lea.vmem %s7, %s704
      %p706 = scmp.lt.s32.totalorder %s25, 1
      %s707 = scalar_select %p706, %s25, 1
      %p708 = scmp.lt.s32.totalorder %s26, 0
      %s709 = scalar_select %p708, %s26, 0
      %s710 = sadd.s32 %s709, %s707
      %s711 = smul.addr %s710, 4
      %s712 = scalar_lea.vmem %s8, %s711
      %p713 = scmp.lt.s32.totalorder %s25, 1
      %s714 = scalar_select %p713, %s25, 1
      %p715 = scmp.lt.s32.totalorder %s26, 0
      %s716 = scalar_select %p715, %s26, 0
      %s717 = sadd.s32 %s716, %s714
      %s718 = smul.addr %s717, 4
      %s719 = scalar_lea.vmem %s9, %s718
      // Predicated region
      $region37: #{attention_block.3} parent=35 // pred_check
        %p720 = pneg %p151
      $region38: #{attention_block.3} parent=35 // pred_check_branch
        %722 = sbr.rel (%p720) target = $region40
      $region39: #{attention_block.3} parent=35 // pred_region
        %s723 = smul.u32 2, %s26
      $region40: #{attention_block.3} parent=35 // pred_fallthru
        _
      // Predicated region
      $region41: #{attention_block.3} parent=35 // pred_check
        %p724 = pneg %p179
      $region42: #{attention_block.3} parent=35 // pred_check_branch
        %726 = sbr.rel (%p724) target = $region44
      $region43: #{attention_block.3} parent=35 // pred_region
        %s727 = smul.u32 2, %s26
      $region44: #{attention_block.3} parent=35 // pred_fallthru
        _
      // Predicated region
      $region45: #{attention_block.3} parent=35 // pred_check
        %p728 = pneg %p207
      $region46: #{attention_block.3} parent=35 // pred_check_branch
        %730 = sbr.rel (%p728) target = $region48
      $region47: #{attention_block.3} parent=35 // pred_region
        _
      $region48: #{attention_block.3} parent=35 // pred_fallthru
        _
      // Predicated region
      $region49: #{attention_block.3} parent=35 // pred_check
        %p731 = pneg %p235
      $region50: #{attention_block.3} parent=35 // pred_check_branch
        %733 = sbr.rel (%p731) target = $region52
      $region51: #{attention_block.3} parent=35 // pred_region
        _
      $region52: #{attention_block.3} parent=35 // pred_fallthru
        _
      // Predicated region
      $region53: #{attention_block.3} parent=35 // pred_check
        %p734 = pneg %p263
      $region54: #{attention_block.3} parent=35 // pred_check_branch
        %736 = sbr.rel (%p734) target = $region56
      $region55: #{attention_block.3} parent=35 // pred_region
        _
      $region56: #{attention_block.3} parent=35 // pred_fallthru
        _
      // Predicated region
      $region57: #{attention_block.3} parent=35 // pred_check
        %p737 = pneg %p291
      $region58: #{attention_block.3} parent=35 // pred_check_branch
        %739 = sbr.rel (%p737) target = $region60
      $region59: #{attention_block.3} parent=35 // pred_region
        _
      $region60: #{attention_block.3} parent=35 // pred_fallthru
        _
    $region36: #{attention_block.3} parent=5 // pred_fallthru
      _
    %p740 = scmp.le.s32.totalorder 2, %s16
    // Predicated region
    $region61: #{attention_block.3} parent=5 // pred_check
      %p741 = pneg %p740
    $region62: #{attention_block.3} parent=5 // pred_check_branch
      %743 = sbr.rel (%p741) target = $region64
    $region63: #{attention_block.3} parent=5 // pred_region
      %s744 = ssub.s32 %s16, 2
      // Predicated region
      $region65: #{attention_block.3} parent=63 // pred_check
        %p745 = pneg %p157
      $region66: #{attention_block.3} parent=63 // pred_check_branch
        %747 = sbr.rel (%p745) target = $region68
      $region67: #{attention_block.3} parent=63 // pred_region
        %s748 = smul.u32 2, %s28
        %p749 = scmp.lt.s32.totalorder %s27, 1
        %s750 = scalar_select %p749, %s27, 1
        %p751 = scmp.lt.s32.totalorder %s748, 1
        %s752 = scalar_select %p751, %s748, 1
        %s753 = smul.addr %s750, 2
        %s754 = sadd.s32 %s752, %s753
        %s755 = smul.addr %s754, 2
        %s756 = scalar_lea.vmem %s4, %s755
      $region68: #{attention_block.3} parent=63 // pred_fallthru
        _
      // Predicated region
      $region69: #{attention_block.3} parent=63 // pred_check
        %p757 = pneg %p185
      $region70: #{attention_block.3} parent=63 // pred_check_branch
        %759 = sbr.rel (%p757) target = $region72
      $region71: #{attention_block.3} parent=63 // pred_region
        %s760 = smul.u32 2, %s28
        %p761 = scmp.lt.s32.totalorder %s27, 1
        %s762 = scalar_select %p761, %s27, 1
        %p763 = scmp.lt.s32.totalorder %s760, 1
        %s764 = scalar_select %p763, %s760, 1
        %s765 = smul.addr %s762, 2
        %s766 = sadd.s32 %s764, %s765
        %s767 = smul.addr %s766, 2
        %s768 = scalar_lea.vmem %s5, %s767
      $region72: #{attention_block.3} parent=63 // pred_fallthru
        _
      // Predicated region
      $region73: #{attention_block.3} parent=63 // pred_check
        %p769 = pneg %p213
      $region74: #{attention_block.3} parent=63 // pred_check_branch
        %771 = sbr.rel (%p769) target = $region76
      $region75: #{attention_block.3} parent=63 // pred_region
        %p772 = scmp.lt.s32.totalorder %s27, 1
        %s773 = scalar_select %p772, %s27, 1
        %p774 = scmp.lt.s32.totalorder %s28, 0
        %s775 = scalar_select %p774, %s28, 0
        %s776 = sadd.s32 %s775, %s773
        %s777 = smul.addr %s776, 4
        %s778 = scalar_lea.vmem %s6, %s777
      $region76: #{attention_block.3} parent=63 // pred_fallthru
        _
      // Predicated region
      $region77: #{attention_block.3} parent=63 // pred_check
        %p779 = pneg %p241
      $region78: #{attention_block.3} parent=63 // pred_check_branch
        %781 = sbr.rel (%p779) target = $region80
      $region79: #{attention_block.3} parent=63 // pred_region
        %p782 = scmp.lt.s32.totalorder %s27, 1
        %s783 = scalar_select %p782, %s27, 1
        %p784 = scmp.lt.s32.totalorder %s28, 0
        %s785 = scalar_select %p784, %s28, 0
        %s786 = sadd.s32 %s785, %s783
        %s787 = smul.addr %s786, 4
        %s788 = scalar_lea.vmem %s7, %s787
      $region80: #{attention_block.3} parent=63 // pred_fallthru
        _
      // Predicated region
      $region81: #{attention_block.3} parent=63 // pred_check
        %p789 = pneg %p269
      $region82: #{attention_block.3} parent=63 // pred_check_branch
        %791 = sbr.rel (%p789) target = $region84
      $region83: #{attention_block.3} parent=63 // pred_region
        %p792 = scmp.lt.s32.totalorder %s27, 1
        %s793 = scalar_select %p792, %s27, 1
        %p794 = scmp.lt.s32.totalorder %s28, 0
        %s795 = scalar_select %p794, %s28, 0
        %s796 = sadd.s32 %s795, %s793
        %s797 = smul.addr %s796, 4
        %s798 = scalar_lea.vmem %s8, %s797
      $region84: #{attention_block.3} parent=63 // pred_fallthru
        _
      // Predicated region
      $region85: #{attention_block.3} parent=63 // pred_check
        %p799 = pneg %p297
      $region86: #{attention_block.3} parent=63 // pred_check_branch
        %801 = sbr.rel (%p799) target = $region88
      $region87: #{attention_block.3} parent=63 // pred_region
        %p802 = scmp.lt.s32.totalorder %s27, 1
        %s803 = scalar_select %p802, %s27, 1
        %p804 = scmp.lt.s32.totalorder %s28, 0
        %s805 = scalar_select %p804, %s28, 0
        %s806 = sadd.s32 %s805, %s803
        %s807 = smul.addr %s806, 4
        %s808 = scalar_lea.vmem %s9, %s807
      $region88: #{attention_block.3} parent=63 // pred_fallthru
        _
    $region64: #{attention_block.3} parent=5 // pred_fallthru
      _
  $region6: #{attention_block.3} parent=0 // loop_footer
    %s20 = sadd.s32 1, %s16
  $region7: #{attention_block.3} parent=0 // loop_footer_branch
    %15 = sbr.rel target = $region3
  $region8: #{attention_block.3} parent=0 // loop_exit
    _

</llo_original>
